<compile_context>
chip_gen: v6e
topology: v6e:2x2x1
jax: 0.10.0
libtpu: 0.0.40
codegen_flags: <defaults>
</compile_context>

<pallas_src>
import jax
import jax.numpy as jnp
import numpy as np
from jax.experimental import pallas as pl
from jax.experimental.pallas import tpu as pltpu

BN_EPS = 1e-5


# ----------------------------------------------------------------------------
# Single fused kernel, TB images per grid step:
#   features (1x1 conv stand-in) -> ReLU -> GAP (ones-matmul on the MXU)
#   -> reducer_block (Linear with BN folded in, ReLU; Dropout = identity)
#   -> classifier Linear; extra-info contribution precomputed as a bias.
# ----------------------------------------------------------------------------
def _fused_kernel(x_ref, wf_ref, avg_ref, w1_ref, b1_ref, w2x_ref, bias_ref,
                  xr_ref, logits_ref):
    # x_ref: (TB*HW, C) bf16   wf_ref: (C, F) bf16
    f = jnp.dot(x_ref[...], wf_ref[...],
                preferred_element_type=jnp.float32)                 # (TB*HW, F)
    f = jnp.maximum(f, 0.0).astype(jnp.bfloat16)                    # relu(xf)

    # Global average pool as an MXU matmul: avg is block-diag 1/HW, (TB, TB*HW).
    pooled = jnp.dot(avg_ref[...], f,
                     preferred_element_type=jnp.float32)            # (TB, F)

    # reducer_block: Linear(1024 -> NR) with BatchNorm folded in, then ReLU.
    y = jnp.dot(pooled.astype(jnp.bfloat16), w1_ref[...],
                preferred_element_type=jnp.float32) + b1_ref[...]   # (TB, NR)
    xr = jnp.maximum(y, 0.0)
    xr_ref[...] = xr[None]                                          # (1, TB, NR)

    # classifier: cat([xr, extra]) @ W2.T + b2 == xr @ W2x + (extra @ W2e + b2)
    # The second term (+ b2) is precomputed per batch row in the wrapper.
    logits = jnp.dot(xr.astype(jnp.bfloat16), w2x_ref[...],
                     preferred_element_type=jnp.float32) + bias_ref[0]  # (TB, NCp)
    logits_ref[...] = logits[None]                                  # (1, TB, NCp)


# ----------------------------------------------------------------------------
# Wrapper
# ----------------------------------------------------------------------------
@jax.jit
def net_forward(img_nchw, extra_info, params):
    B, C, H, W = img_nchw.shape
    HW = H * W
    F = params["w_feat"].shape[1]               # 1024
    NR = params["w1"].shape[0]                  # neurons_class (256)
    NC = params["w2"].shape[0]                  # num_class
    NCp = max(128, ((NC + 127) // 128) * 128)   # lane-dense logits width

    # Batch tile: >= 2 grid steps when B >= 2 (v7x megacore), capped so the
    # f32 relu intermediate (TB*HW*F*4 B ~= TB MiB here) stays inside scoped VMEM.
    TB = min(max(1, (B + 1) // 2), 8)
    G = pl.cdiv(B, TB)
    Bp = G * TB

    # NCHW -> (B, HW, C) channels-last flatten; pad batch; cast to bf16 rows.
    x_chl = jnp.transpose(img_nchw, (0, 2, 3, 1)).reshape(B, HW, C)
    if Bp != B:
        x_chl = jnp.pad(x_chl, ((0, Bp - B), (0, 0), (0, 0)))
    x2d = x_chl.reshape(Bp * HW, C).astype(jnp.bfloat16)

    # Constant GAP matrix: avg[b, b*HW:(b+1)*HW] = 1/HW   (1/256 exact in bf16).
    avg = (jnp.repeat(jnp.eye(TB, dtype=jnp.float32), HW, axis=1) / HW
           ).astype(jnp.bfloat16)                                        # (TB, TB*HW)

    # Fold BatchNorm (eval) into the reducer Linear; cast big weights to bf16.
    scale = params["gamma"] * jax.lax.rsqrt(params["run_var"] + BN_EPS)  # (NR,)
    w1_eff = (params["w1"] * scale[:, None]).T.astype(jnp.bfloat16)      # (F, NR)
    b1_eff = ((params["b1"] - params["run_mean"]) * scale
              + params["beta"])[None]                                    # (1, NR)
    wf = params["w_feat"].astype(jnp.bfloat16)                           # (C, F)

    # Classifier: xr-part of W2, zero-padded to NCp columns (lane-dense store).
    w2x = jnp.zeros((NR, NCp), jnp.float32)
    w2x = w2x.at[:, :NC].set(params["w2"][:, :NR].T).astype(jnp.bfloat16)

    # Extra-info branch + bias folded into a per-row additive term.
    bias = extra_info @ params["w2"][:, NR:].T + params["b2"][None]      # (B, NC)
    bias_p = jnp.zeros((Bp, NCp), jnp.float32).at[:B, :NC].set(bias)
    bias3 = bias_p.reshape(G, TB, NCp)

    xr3, logits3 = pl.pallas_call(
        _fused_kernel,
        grid=(G,),
        in_specs=[
            pl.BlockSpec((TB * HW, C),  lambda g: (g, 0)),     # image rows (per step)
            pl.BlockSpec((C, F),        lambda g: (0, 0)),     # w_feat     (resident)
            pl.BlockSpec((TB, TB * HW), lambda g: (0, 0)),     # GAP matrix (resident)
            pl.BlockSpec((F, NR),       lambda g: (0, 0)),     # w1_eff     (resident)
            pl.BlockSpec((1, NR),       lambda g: (0, 0)),     # b1_eff     (resident)
            pl.BlockSpec((NR, NCp),     lambda g: (0, 0)),     # w2x        (resident)
            pl.BlockSpec((1, TB, NCp),  lambda g: (g, 0, 0)),  # extra bias (per step)
        ],
        out_specs=(pl.BlockSpec((1, TB, NR),  lambda g: (g, 0, 0)),
                   pl.BlockSpec((1, TB, NCp), lambda g: (g, 0, 0))),
        out_shape=(jax.ShapeDtypeStruct((G, TB, NR), jnp.float32),
                   jax.ShapeDtypeStruct((G, TB, NCp), jnp.float32)),
        compiler_params=pltpu.CompilerParams(
            dimension_semantics=("parallel",)),
    )(x2d, wf, avg, w1_eff, b1_eff, w2x, bias3)

    xr = xr3.reshape(Bp, NR)[:B]
    logits = logits3.reshape(Bp, NCp)[:B, :NC]
    return xr, logits                       # == (x, x_out) in PyTorch


# Pure-JAX reference (mirrors the PyTorch forward, eval mode, full f32)
def net_reference(img_nchw, extra_info, params):
    B, C, H, W = img_nchw.shape
    x = jnp.transpose(img_nchw, (0, 2, 3, 1)).reshape(B, H * W, C)
    f = jnp.maximum(jnp.einsum("bsc,cf->bsf", x, params["w_feat"]), 0.0)
    pooled = f.mean(axis=1)
    y = pooled @ params["w1"].T + params["b1"]
    y = ((y - params["run_mean"]) / jnp.sqrt(params["run_var"] + BN_EPS)
         * params["gamma"] + params["beta"])
    xr = jnp.maximum(y, 0.0)
    agg = jnp.concatenate([xr, extra_info], axis=1)
    logits = agg @ params["w2"].T + params["b2"]
    return xr, logits


def make_params(key, c_in, feat=1024, neurons_class=256, n_extra=4, num_class=8):
    ks = jax.random.split(key, 8)
    return {
        "w_feat":   jax.random.normal(ks[0], (c_in, feat), jnp.float32) * 0.05,
        "w1":       jax.random.normal(ks[1], (neurons_class, feat), jnp.float32) * 0.02,
        "b1":       jax.random.normal(ks[2], (neurons_class,), jnp.float32) * 0.01,
        "gamma":    jax.random.uniform(ks[3], (neurons_class,), jnp.float32, 0.5, 1.5),
        "beta":     jax.random.normal(ks[4], (neurons_class,), jnp.float32) * 0.05,
        "run_mean": jax.random.normal(ks[5], (neurons_class,), jnp.float32) * 0.05,
        "run_var":  jax.random.uniform(ks[6], (neurons_class,), jnp.float32, 0.5, 1.5),
        "w2":       jax.random.normal(ks[7], (num_class, neurons_class + n_extra),
                                      jnp.float32) * 0.05,
        "b2":       jnp.zeros((num_class,), jnp.float32),
    }


if __name__ == "__main__":
    key = jax.random.PRNGKey(0)
    k_img, k_extra, k_par = jax.random.split(key, 3)

    B, C, H, W = 2, 4, 16, 16
    N_EXTRA, NUM_CLASS = 4, 8

    img = jax.random.normal(k_img, (B, C, H, W), jnp.float32)
    extra_info = jax.random.normal(k_extra, (B, N_EXTRA), jnp.float32)
    params = make_params(k_par, C, n_extra=N_EXTRA, num_class=NUM_CLASS)

    x_red, logits = net_forward(img, extra_info, params)
    jax.block_until_ready((x_red, logits))

    x_ref, logits_ref = net_reference(img, extra_info, params)
    # bf16 weights / activations in the kernel (f32 accumulation everywhere)
    # -> relaxed tolerances.
    np.testing.assert_allclose(np.asarray(x_red), np.asarray(x_ref),
                               rtol=2e-2, atol=2e-2)
    np.testing.assert_allclose(np.asarray(logits), np.asarray(logits_ref),
                               rtol=2e-2, atol=2e-2)

    print("KERNEL_OK")
</pallas_src>

<mosaic_0001>
module attributes {stable_mosaic.version = 11 : i64} {
  func.func @_fused_kernel(%arg0: i32, %arg1: memref<256x4xbf16, #tpu.memory_space<vmem>>, %arg2: memref<4x1024xbf16, #tpu.memory_space<vmem>>, %arg3: memref<1x256xbf16, #tpu.memory_space<vmem>>, %arg4: memref<1024x256xbf16, #tpu.memory_space<vmem>>, %arg5: memref<1x256xf32, #tpu.memory_space<vmem>>, %arg6: memref<256x128xbf16, #tpu.memory_space<vmem>>, %arg7: memref<1x1x128xf32, #tpu.memory_space<vmem>>, %arg8: memref<1x1x256xf32, #tpu.memory_space<vmem>>, %arg9: memref<1x1x128xf32, #tpu.memory_space<vmem>>) attributes {dimension_semantics = [#tpu.dimension_semantics<parallel>], iteration_bounds = array<i64: 2>, scalar_prefetch = 0 : i64, scratch_operands = 0 : i64, tpu.core_type = #tpu.core_type<tc>, window_params = [{transform_indices = @transform_0, window_bounds = array<i64: 256, 4>}, {pipeline_mode = #tpu.pipeline_mode<synchronous>, transform_indices = @transform_1, window_bounds = array<i64: 4, 1024>}, {pipeline_mode = #tpu.pipeline_mode<synchronous>, transform_indices = @transform_2, window_bounds = array<i64: 1, 256>}, {pipeline_mode = #tpu.pipeline_mode<synchronous>, transform_indices = @transform_3, window_bounds = array<i64: 1024, 256>}, {pipeline_mode = #tpu.pipeline_mode<synchronous>, transform_indices = @transform_4, window_bounds = array<i64: 1, 256>}, {pipeline_mode = #tpu.pipeline_mode<synchronous>, transform_indices = @transform_5, window_bounds = array<i64: 256, 128>}, {transform_indices = @transform_6, window_bounds = array<i64: 1, 1, 128>}, {transform_indices = @transform_7, window_bounds = array<i64: 1, 1, 256>}, {transform_indices = @transform_8, window_bounds = array<i64: 1, 1, 128>}]} {
    %c0 = arith.constant 0 : index
    %c0_0 = arith.constant 0 : index
    %0 = vector.load %arg1[%c0, %c0_0] : memref<256x4xbf16, #tpu.memory_space<vmem>>, vector<256x4xbf16>
    %c0_1 = arith.constant 0 : index
    %c0_2 = arith.constant 0 : index
    %1 = vector.load %arg2[%c0_1, %c0_2] : memref<4x1024xbf16, #tpu.memory_space<vmem>>, vector<4x1024xbf16>
    %cst = arith.constant dense<0.000000e+00> : vector<256x1024xf32>
    %2 = tpu.matmul %0, %1, %cst {dimension_numbers = #tpu.dot_dimension_numbers<[1], [0], [0], [1], [0, 0, 1, 1], [], []>} : vector<256x4xbf16>, vector<4x1024xbf16>, vector<256x1024xf32> -> vector<256x1024xf32>
    %cst_3 = arith.constant 0.000000e+00 : f32
    %3 = vector.broadcast %cst_3 : f32 to vector<256x1024xf32>
    %4 = arith.maximumf %2, %3 : vector<256x1024xf32>
    %5 = arith.truncf %4 : vector<256x1024xf32> to vector<256x1024xbf16>
    %c0_4 = arith.constant 0 : index
    %c0_5 = arith.constant 0 : index
    %6 = vector.load %arg3[%c0_4, %c0_5] : memref<1x256xbf16, #tpu.memory_space<vmem>>, vector<1x256xbf16>
    %cst_6 = arith.constant dense<0.000000e+00> : vector<1x1024xf32>
    %7 = tpu.matmul %6, %5, %cst_6 {dimension_numbers = #tpu.dot_dimension_numbers<[1], [0], [0], [1], [0, 0, 1, 1], [], []>} : vector<1x256xbf16>, vector<256x1024xbf16>, vector<1x1024xf32> -> vector<1x1024xf32>
    %8 = arith.truncf %7 : vector<1x1024xf32> to vector<1x1024xbf16>
    %c0_7 = arith.constant 0 : index
    %c0_8 = arith.constant 0 : index
    %9 = vector.load %arg4[%c0_7, %c0_8] : memref<1024x256xbf16, #tpu.memory_space<vmem>>, vector<1024x256xbf16>
    %cst_9 = arith.constant dense<0.000000e+00> : vector<1x256xf32>
    %10 = tpu.matmul %8, %9, %cst_9 {dimension_numbers = #tpu.dot_dimension_numbers<[1], [0], [0], [1], [0, 0, 1, 1], [], []>} : vector<1x1024xbf16>, vector<1024x256xbf16>, vector<1x256xf32> -> vector<1x256xf32>
    %c0_10 = arith.constant 0 : index
    %c0_11 = arith.constant 0 : index
    %11 = vector.load %arg5[%c0_10, %c0_11] : memref<1x256xf32, #tpu.memory_space<vmem>>, vector<1x256xf32>
    %12 = arith.addf %10, %11 : vector<1x256xf32>
    %cst_12 = arith.constant 0.000000e+00 : f32
    %13 = vector.broadcast %cst_12 : f32 to vector<1x256xf32>
    %14 = arith.maximumf %12, %13 : vector<1x256xf32>
    %15 = vector.shape_cast %14 : vector<1x256xf32> to vector<1x1x256xf32>
    %c0_13 = arith.constant 0 : index
    %c0_14 = arith.constant 0 : index
    %c0_15 = arith.constant 0 : index
    %16 = vector.load %arg8[%c0_13, %c0_14, %c0_15] : memref<1x1x256xf32, #tpu.memory_space<vmem>>, vector<1x1x256xf32>
    tpu.vector_store %arg8[%c0_13, %c0_14, %c0_15], %15 {strides = array<i32>} : memref<1x1x256xf32, #tpu.memory_space<vmem>>, vector<1x1x256xf32>,
    %17 = arith.truncf %14 : vector<1x256xf32> to vector<1x256xbf16>
    %c0_16 = arith.constant 0 : index
    %c0_17 = arith.constant 0 : index
    %18 = vector.load %arg6[%c0_16, %c0_17] : memref<256x128xbf16, #tpu.memory_space<vmem>>, vector<256x128xbf16>
    %cst_18 = arith.constant dense<0.000000e+00> : vector<1x128xf32>
    %19 = tpu.matmul %17, %18, %cst_18 {dimension_numbers = #tpu.dot_dimension_numbers<[1], [0], [0], [1], [0, 0, 1, 1], [], []>} : vector<1x256xbf16>, vector<256x128xbf16>, vector<1x128xf32> -> vector<1x128xf32>
    %c0_19 = arith.constant 0 : index
    %c0_20 = arith.constant 0 : index
    %c0_21 = arith.constant 0 : index
    %20 = vector.load %arg7[%c0_19, %c0_20, %c0_21] : memref<1x1x128xf32, #tpu.memory_space<vmem>>, vector<1x1x128xf32>
    %21 = vector.shape_cast %20 : vector<1x1x128xf32> to vector<1x128xf32>
    %22 = arith.addf %19, %21 : vector<1x128xf32>
    %23 = vector.shape_cast %22 : vector<1x128xf32> to vector<1x1x128xf32>
    %c0_22 = arith.constant 0 : index
    %c0_23 = arith.constant 0 : index
    %c0_24 = arith.constant 0 : index
    %24 = vector.load %arg9[%c0_22, %c0_23, %c0_24] : memref<1x1x128xf32, #tpu.memory_space<vmem>>, vector<1x1x128xf32>
    tpu.vector_store %arg9[%c0_22, %c0_23, %c0_24], %23 {strides = array<i32>} : memref<1x1x128xf32, #tpu.memory_space<vmem>>, vector<1x1x128xf32>,
    return
  }
  func.func @transform_0(%arg0: i32) -> (i32, i32) {
    %c0_i32 = arith.constant 0 : i32
    %c0_i32_0 = arith.constant 0 : i32
    return %arg0, %c0_i32 : i32, i32
  }
  func.func @transform_1(%arg0: i32) -> (i32, i32) {
    %c0_i32 = arith.constant 0 : i32
    %c0_i32_0 = arith.constant 0 : i32
    %c0_i32_1 = arith.constant 0 : i32
    return %c0_i32, %c0_i32_0 : i32, i32
  }
  func.func @transform_2(%arg0: i32) -> (i32, i32) {
    %c0_i32 = arith.constant 0 : i32
    %c0_i32_0 = arith.constant 0 : i32
    %c0_i32_1 = arith.constant 0 : i32
    return %c0_i32, %c0_i32_0 : i32, i32
  }
  func.func @transform_3(%arg0: i32) -> (i32, i32) {
    %c0_i32 = arith.constant 0 : i32
    %c0_i32_0 = arith.constant 0 : i32
    %c0_i32_1 = arith.constant 0 : i32
    return %c0_i32, %c0_i32_0 : i32, i32
  }
  func.func @transform_4(%arg0: i32) -> (i32, i32) {
    %c0_i32 = arith.constant 0 : i32
    %c0_i32_0 = arith.constant 0 : i32
    %c0_i32_1 = arith.constant 0 : i32
    return %c0_i32, %c0_i32_0 : i32, i32
  }
  func.func @transform_5(%arg0: i32) -> (i32, i32) {
    %c0_i32 = arith.constant 0 : i32
    %c0_i32_0 = arith.constant 0 : i32
    %c0_i32_1 = arith.constant 0 : i32
    return %c0_i32, %c0_i32_0 : i32, i32
  }
  func.func @transform_6(%arg0: i32) -> (i32, i32, i32) {
    %c0_i32 = arith.constant 0 : i32
    %c0_i32_0 = arith.constant 0 : i32
    %c0_i32_1 = arith.constant 0 : i32
    return %arg0, %c0_i32, %c0_i32_0 : i32, i32, i32
  }
  func.func @transform_7(%arg0: i32) -> (i32, i32, i32) {
    %c0_i32 = arith.constant 0 : i32
    %c0_i32_0 = arith.constant 0 : i32
    %c0_i32_1 = arith.constant 0 : i32
    return %arg0, %c0_i32, %c0_i32_0 : i32, i32, i32
  }
  func.func @transform_8(%arg0: i32) -> (i32, i32, i32) {
    %c0_i32 = arith.constant 0 : i32
    %c0_i32_0 = arith.constant 0 : i32
    %c0_i32_1 = arith.constant 0 : i32
    return %arg0, %c0_i32, %c0_i32_0 : i32, i32, i32
  }
}

</mosaic_0001>

<llo_original>
// kernel: net_forward.1
$region0: #{net_forward.1}
  #allocation0 [shape = 'u32[]', space=smem, size = 0x4, offset = 0x4, fixed_abs, tag = 'smem constant byte address 0x4 - core index']
  #allocation1 [shape = 'u32[144,128]{1,0:T(1,128)}', space=vmem, size = 0x12000, scoped, tag = 'internal scratch']
  %s0 = inlined_call_operand.vmem [shape: bf16[512,4], index: 0, kind: input, shape index: {}]
  %s1 = inlined_call_operand.vmem [shape: bf16[4,1024], index: 1, kind: input, shape index: {}]
  %s2 = inlined_call_operand.vmem [shape: bf16[1,256], index: 2, kind: input, shape index: {}]
  %s3 = inlined_call_operand.vmem [shape: bf16[1024,256], index: 3, kind: input, shape index: {}]
  %s4 = inlined_call_operand.vmem [shape: f32[1,256], index: 4, kind: input, shape index: {}]
  %s5 = inlined_call_operand.vmem [shape: bf16[256,128], index: 5, kind: input, shape index: {}]
  %s6 = inlined_call_operand.vmem [shape: f32[2,1,128], index: 6, kind: input, shape index: {}]
  %s7 = inlined_call_operand.vmem [shape: f32[2,1,256], index: 7, kind: output, shape index: {0}]
  %s8 = inlined_call_operand.hbm [shape: f32[2,1,128], index: 8, kind: output, shape index: {1}]
  %9 = xla_tuple %s7, %s8
  %s10 = sld [smem:[#allocation0]]
  $region69: #{net_forward.1} parent=0
    _
  %s12 = ssub.s32 1, %s10
  %s13 = scalar_select 0, %s12, %s10
  $region1: #{net_forward.1} parent=0
    #allocation2 [shape = 'u8[1024]{0}', space=vmem, size = 0x400, scoped, tag = 'output window, operand 1']
    #allocation3 [shape = 's32[2]{0}', space=sflag, size = 0x8, scoped, tag = 'scoped memory for net_forward.1']
    %14 = vsyncpa [#allocation3], 0
    %s15 = scalar_lea.sflag [#allocation3], 1
    %16 = vsyncpa %s15, 0
    loop: start=0, step=1, limit=4
    $region2: #{net_forward.1} parent=1 // loop_pre_header
      _
    $region3: #{net_forward.1} parent=1 // loop_header
      %s18 = sphi 0, %s22
      %p19 = scmp.ge.s32.totalorder %s18, 4
      %s28 = sphi 0, %s30
      %s31 = sphi 0, %s28
      %s32 = sphi 0, %s31
      %s48 = sphi 0, %s32
      %s52 = sphi 0, %s52
      %s54 = sphi 0, %s52
      %s55 = sphi 0, %s54
      %s69 = sphi 0, %s55
      %s73 = sphi 0, %s73
      %s75 = sphi 0, %s73
      %s76 = sphi 0, %s75
      %s90 = sphi 0, %s76
      %s94 = sphi 0, %s94
      %s96 = sphi 0, %s94
      %s97 = sphi 0, %s96
      %s111 = sphi 0, %s97
      %s115 = sphi 0, %s115
      %s117 = sphi 0, %s115
      %s118 = sphi 0, %s117
      %s132 = sphi 0, %s118
      %s136 = sphi 0, %s136
      %s138 = sphi 0, %s136
      %s139 = sphi 0, %s138
      %s153 = sphi 0, %s139
      %s159 = sphi 0, %s161
      %s162 = sphi 0, %s159
      %s163 = sphi 0, %s162
      %s179 = sphi 0, %s163
      %s185 = sphi 0, %s187
      %s188 = sphi 0, %s185
      %s189 = sphi 0, %s188
      %s205 = sphi 0, %s189
      %s211 = sphi 0, %s213
      %s214 = sphi 0, %s211
      %s215 = sphi 0, %s214
      %s231 = sphi 0, %s215
    $region4: #{net_forward.1} parent=1 // loop_header_branch
      %21 = sbr.rel (%p19) target = $region8
    $region5: #{net_forward.1} parent=1 // loop_body
      %s23 = ssub.s32 %s18, 1
      %s24 = ssub.s32 %s18, 2
      %s25 = sadd.s32 %s18, 1
      %s26 = ssub.s32 %s18, %s25
      %p27 = scmp.eq.s32.totalorder %s26, 0
      %s29 = sadd.s32 %s28, 1
      %s30 = scalar_select %p27, %s28, %s29
      %p33 = pneg %p27
      %p34 = scmp.eq.s32.totalorder %s18, 1
      %p35 = por %p33, %p34
      %p36 = scmp.ne.s32.totalorder %s28, %s31
      %p37 = scmp.eq.s32.totalorder %s18, 0
      %p38 = por %p36, %p37
      %p39 = scmp.ne.s32.totalorder %s28, %s31
      %p40 = scmp.eq.s32.totalorder %s23, 1
      %p41 = por %p39, %p40
      %p42 = scmp.ne.s32.totalorder %s31, %s32
      %p43 = scmp.eq.s32.totalorder %s23, 0
      %p44 = por %p42, %p43
      %p45 = scmp.ne.s32.totalorder %s31, %s32
      %p46 = scmp.eq.s32.totalorder %s24, 1
      %p47 = por %p45, %p46
      %p49 = scmp.ne.s32.totalorder %s32, %s48
      %p50 = scmp.eq.s32.totalorder %s24, 0
      %p51 = por %p49, %p50
      %s53 = sadd.s32 %s52, 1
      %p56 = scmp.eq.s32.totalorder %s18, 1
      %p57 = scmp.ne.s32.totalorder %s52, %s54
      %p58 = scmp.eq.s32.totalorder %s18, 0
      %p59 = por %p57, %p58
      %p60 = scmp.ne.s32.totalorder %s52, %s54
      %p61 = scmp.eq.s32.totalorder %s23, 1
      %p62 = por %p60, %p61
      %p63 = scmp.ne.s32.totalorder %s54, %s55
      %p64 = scmp.eq.s32.totalorder %s23, 0
      %p65 = por %p63, %p64
      %p66 = scmp.ne.s32.totalorder %s54, %s55
      %p67 = scmp.eq.s32.totalorder %s24, 1
      %p68 = por %p66, %p67
      %p70 = scmp.ne.s32.totalorder %s55, %s69
      %p71 = scmp.eq.s32.totalorder %s24, 0
      %p72 = por %p70, %p71
      %s74 = sadd.s32 %s73, 1
      %p77 = scmp.eq.s32.totalorder %s18, 1
      %p78 = scmp.ne.s32.totalorder %s73, %s75
      %p79 = scmp.eq.s32.totalorder %s18, 0
      %p80 = por %p78, %p79
      %p81 = scmp.ne.s32.totalorder %s73, %s75
      %p82 = scmp.eq.s32.totalorder %s23, 1
      %p83 = por %p81, %p82
      %p84 = scmp.ne.s32.totalorder %s75, %s76
      %p85 = scmp.eq.s32.totalorder %s23, 0
      %p86 = por %p84, %p85
      %p87 = scmp.ne.s32.totalorder %s75, %s76
      %p88 = scmp.eq.s32.totalorder %s24, 1
      %p89 = por %p87, %p88
      %p91 = scmp.ne.s32.totalorder %s76, %s90
      %p92 = scmp.eq.s32.totalorder %s24, 0
      %p93 = por %p91, %p92
      %s95 = sadd.s32 %s94, 1
      %p98 = scmp.eq.s32.totalorder %s18, 1
      %p99 = scmp.ne.s32.totalorder %s94, %s96
      %p100 = scmp.eq.s32.totalorder %s18, 0
      %p101 = por %p99, %p100
      %p102 = scmp.ne.s32.totalorder %s94, %s96
      %p103 = scmp.eq.s32.totalorder %s23, 1
      %p104 = por %p102, %p103
      %p105 = scmp.ne.s32.totalorder %s96, %s97
      %p106 = scmp.eq.s32.totalorder %s23, 0
      %p107 = por %p105, %p106
      %p108 = scmp.ne.s32.totalorder %s96, %s97
      %p109 = scmp.eq.s32.totalorder %s24, 1
      %p110 = por %p108, %p109
      %p112 = scmp.ne.s32.totalorder %s97, %s111
      %p113 = scmp.eq.s32.totalorder %s24, 0
      %p114 = por %p112, %p113
      %s116 = sadd.s32 %s115, 1
      %p119 = scmp.eq.s32.totalorder %s18, 1
      %p120 = scmp.ne.s32.totalorder %s115, %s117
      %p121 = scmp.eq.s32.totalorder %s18, 0
      %p122 = por %p120, %p121
      %p123 = scmp.ne.s32.totalorder %s115, %s117
      %p124 = scmp.eq.s32.totalorder %s23, 1
      %p125 = por %p123, %p124
      %p126 = scmp.ne.s32.totalorder %s117, %s118
      %p127 = scmp.eq.s32.totalorder %s23, 0
      %p128 = por %p126, %p127
      %p129 = scmp.ne.s32.totalorder %s117, %s118
      %p130 = scmp.eq.s32.totalorder %s24, 1
      %p131 = por %p129, %p130
      %p133 = scmp.ne.s32.totalorder %s118, %s132
      %p134 = scmp.eq.s32.totalorder %s24, 0
      %p135 = por %p133, %p134
      %s137 = sadd.s32 %s136, 1
      %p140 = scmp.eq.s32.totalorder %s18, 1
      %p141 = scmp.ne.s32.totalorder %s136, %s138
      %p142 = scmp.eq.s32.totalorder %s18, 0
      %p143 = por %p141, %p142
      %p144 = scmp.ne.s32.totalorder %s136, %s138
      %p145 = scmp.eq.s32.totalorder %s23, 1
      %p146 = por %p144, %p145
      %p147 = scmp.ne.s32.totalorder %s138, %s139
      %p148 = scmp.eq.s32.totalorder %s23, 0
      %p149 = por %p147, %p148
      %p150 = scmp.ne.s32.totalorder %s138, %s139
      %p151 = scmp.eq.s32.totalorder %s24, 1
      %p152 = por %p150, %p151
      %p154 = scmp.ne.s32.totalorder %s139, %s153
      %p155 = scmp.eq.s32.totalorder %s24, 0
      %p156 = por %p154, %p155
      %s157 = ssub.s32 %s18, %s25
      %p158 = scmp.eq.s32.totalorder %s157, 0
      %s160 = sadd.s32 %s159, 1
      %s161 = scalar_select %p158, %s159, %s160
      %p164 = pneg %p158
      %p165 = scmp.eq.s32.totalorder %s18, 1
      %p166 = por %p164, %p165
      %p167 = scmp.ne.s32.totalorder %s159, %s162
      %p168 = scmp.eq.s32.totalorder %s18, 0
      %p169 = por %p167, %p168
      %p170 = scmp.ne.s32.totalorder %s159, %s162
      %p171 = scmp.eq.s32.totalorder %s23, 1
      %p172 = por %p170, %p171
      %p173 = scmp.ne.s32.totalorder %s162, %s163
      %p174 = scmp.eq.s32.totalorder %s23, 0
      %p175 = por %p173, %p174
      %p176 = scmp.ne.s32.totalorder %s162, %s163
      %p177 = scmp.eq.s32.totalorder %s24, 1
      %p178 = por %p176, %p177
      %p180 = scmp.ne.s32.totalorder %s163, %s179
      %p181 = scmp.eq.s32.totalorder %s24, 0
      %p182 = por %p180, %p181
      %s183 = ssub.s32 %s18, %s25
      %p184 = scmp.eq.s32.totalorder %s183, 0
      %s186 = sadd.s32 %s185, 1
      %s187 = scalar_select %p184, %s185, %s186
      %p190 = pneg %p184
      %p191 = scmp.eq.s32.totalorder %s18, 1
      %p192 = por %p190, %p191
      %p193 = scmp.ne.s32.totalorder %s185, %s188
      %p194 = scmp.eq.s32.totalorder %s18, 0
      %p195 = por %p193, %p194
      %p196 = scmp.ne.s32.totalorder %s185, %s188
      %p197 = scmp.eq.s32.totalorder %s23, 1
      %p198 = por %p196, %p197
      %p199 = scmp.ne.s32.totalorder %s188, %s189
      %p200 = scmp.eq.s32.totalorder %s23, 0
      %p201 = por %p199, %p200
      %p202 = scmp.ne.s32.totalorder %s188, %s189
      %p203 = scmp.eq.s32.totalorder %s24, 1
      %p204 = por %p202, %p203
      %p206 = scmp.ne.s32.totalorder %s189, %s205
      %p207 = scmp.eq.s32.totalorder %s24, 0
      %p208 = por %p206, %p207
      %s209 = ssub.s32 %s18, %s25
      %p210 = scmp.eq.s32.totalorder %s209, 0
      %s212 = sadd.s32 %s211, 1
      %s213 = scalar_select %p210, %s211, %s212
      %p216 = pneg %p210
      %p217 = scmp.eq.s32.totalorder %s18, 1
      %p218 = por %p216, %p217
      %p219 = scmp.ne.s32.totalorder %s211, %s214
      %p220 = scmp.eq.s32.totalorder %s18, 0
      %p221 = por %p219, %p220
      %p222 = scmp.ne.s32.totalorder %s211, %s214
      %p223 = scmp.eq.s32.totalorder %s23, 1
      %p224 = por %p222, %p223
      %p225 = scmp.ne.s32.totalorder %s214, %s215
      %p226 = scmp.eq.s32.totalorder %s23, 0
      %p227 = por %p225, %p226
      %p228 = scmp.ne.s32.totalorder %s214, %s215
      %p229 = scmp.eq.s32.totalorder %s24, 1
      %p230 = por %p228, %p229
      %p232 = scmp.ne.s32.totalorder %s215, %s231
      %p233 = scmp.eq.s32.totalorder %s24, 0
      %p234 = por %p232, %p233
      %p235 = scmp.le.s32.totalorder 1, %s18
      %p236 = scmp.lt.s32.totalorder %s18, 3
      %p237 = pnand %p235, %p236
      %p238 = pneg %p237
      // Predicated region
      $region9: #{net_forward.1} parent=5 // pred_check
        _
      $region10: #{net_forward.1} parent=5 // pred_check_branch
        %240 = sbr.rel (%p237) target = $region12
      $region11: #{net_forward.1} parent=5 // pred_region
        %s241 = ssub.s32 %s18, 1
        // Predicated region
        $region13: #{net_forward.1} parent=11 // pred_check
          %p242 = pneg %p65
        $region14: #{net_forward.1} parent=11 // pred_check_branch
          %244 = sbr.rel (%p242) target = $region16
        $region15: #{net_forward.1} parent=11 // pred_region
          _
        $region16: #{net_forward.1} parent=11 // pred_fallthru
          _
        // Predicated region
        $region17: #{net_forward.1} parent=11 // pred_check
          %p245 = pneg %p86
        $region18: #{net_forward.1} parent=11 // pred_check_branch
          %247 = sbr.rel (%p245) target = $region20
        $region19: #{net_forward.1} parent=11 // pred_region
          _
        $region20: #{net_forward.1} parent=11 // pred_fallthru
          _
        // Predicated region
        $region21: #{net_forward.1} parent=11 // pred_check
          %p248 = pneg %p107
        $region22: #{net_forward.1} parent=11 // pred_check_branch
          %250 = sbr.rel (%p248) target = $region24
        $region23: #{net_forward.1} parent=11 // pred_region
          _
        $region24: #{net_forward.1} parent=11 // pred_fallthru
          _
        // Predicated region
        $region25: #{net_forward.1} parent=11 // pred_check
          %p251 = pneg %p128
        $region26: #{net_forward.1} parent=11 // pred_check_branch
          %253 = sbr.rel (%p251) target = $region28
        $region27: #{net_forward.1} parent=11 // pred_region
          _
        $region28: #{net_forward.1} parent=11 // pred_fallthru
          _
        // Predicated region
        $region29: #{net_forward.1} parent=11 // pred_check
          %p254 = pneg %p149
        $region30: #{net_forward.1} parent=11 // pred_check_branch
          %256 = sbr.rel (%p254) target = $region32
        $region31: #{net_forward.1} parent=11 // pred_region
          _
        $region32: #{net_forward.1} parent=11 // pred_fallthru
          _
      $region12: #{net_forward.1} parent=5 // pred_fallthru
        _
      %p257 = scmp.lt.s32.totalorder %s18, 2
      // Predicated region
      $region33: #{net_forward.1} parent=5 // pred_check
        %p258 = pneg %p257
      $region34: #{net_forward.1} parent=5 // pred_check_branch
        %260 = sbr.rel (%p258) target = $region36
      $region35: #{net_forward.1} parent=5 // pred_region
        // Predicated region
        $region37: #{net_forward.1} parent=35 // pred_check
          %p261 = pneg %p38
        $region38: #{net_forward.1} parent=35 // pred_check_branch
          %263 = sbr.rel (%p261) target = $region40
        $region39: #{net_forward.1} parent=35 // pred_region
          %s264 = smul.u32 32, %s18
          %p265 = scmp.lt.s32.totalorder %s264, 63
          %s266 = scalar_select %p265, %s264, 63
          %s267 = smul.addr %s266, 4
          %s268 = scalar_lea.vmem %s0, %s267
          %s269 = smul.u32 32, %s18
        $region40: #{net_forward.1} parent=35 // pred_fallthru
          _
        // Predicated region
        $region41: #{net_forward.1} parent=35 // pred_check
          %p270 = pneg %p169
        $region42: #{net_forward.1} parent=35 // pred_check_branch
          %272 = sbr.rel (%p270) target = $region44
        $region43: #{net_forward.1} parent=35 // pred_region
          %p273 = scmp.lt.s32.totalorder %s18, 1
          %s274 = scalar_select %p273, %s18, 1
          %s275 = scalar_lea.vmem %s6, %s274
        $region44: #{net_forward.1} parent=35 // pred_fallthru
          _
      $region36: #{net_forward.1} parent=5 // pred_fallthru
        _
      %p276 = scmp.le.s32.totalorder 1, %s18
      %p277 = scmp.lt.s32.totalorder %s18, 3
      %p278 = pnand %p276, %p277
      %p279 = pneg %p278
      // Predicated region
      $region45: #{net_forward.1} parent=5 // pred_check
        _
      $region46: #{net_forward.1} parent=5 // pred_check_branch
        %281 = sbr.rel (%p278) target = $region48
      $region47: #{net_forward.1} parent=5 // pred_region
        %s282 = ssub.s32 %s18, 1
        %s283 = smul.u32 32, %s23
        %p284 = scmp.lt.s32.totalorder %s283, 63
        %s285 = scalar_select %p284, %s283, 63
        %s286 = smul.addr %s285, 4
        %s287 = scalar_lea.vmem %s0, %s286
        %p288 = pneg %p44
        %p289 = pneg %p41
        %p290 = pneg %p65
        %p291 = pneg %p62
        %p292 = pneg %p86
        %p293 = pneg %p83
        %p294 = pneg %p107
        %p295 = pneg %p104
        %p296 = pneg %p128
        %p297 = pneg %p125
        %p298 = pneg %p149
        %p299 = pneg %p146
        %p300 = scmp.lt.s32.totalorder %s23, 1
        %s301 = scalar_select %p300, %s23, 1
        %s302 = scalar_lea.vmem %s6, %s301
        %p303 = pneg %p175
        %p304 = pneg %p172
        %p305 = pneg %p201
        %p306 = pneg %p198
        %p307 = scmp.lt.s32.totalorder %s23, 1
        %s308 = scalar_select %p307, %s23, 1
        %s309 = smul.addr %s308, 2
        %s310 = scalar_lea.vmem %s7, %s309
        %p311 = pneg %p227
        %p312 = pneg %p224
        %s313 = sand.u32 %s214, 1
        %s314 = scalar_lea.sflag [#allocation3], %s313
        %s315 = sand.u32 %s214, 1
        %s316 = scalar_lea.vmem [#allocation2], %s315
        %s317 = smul.u32 32, %s23
        %p318 = scmp.lt.s32.totalorder %s317, 63
        %s319 = scalar_select %p318, %s317, 63
        %s320 = smul.addr %s319, 4
        %s321 = scalar_lea.vmem %s0, %s320
        %s322 = smul.u32 32, %s23
        %p323 = scmp.lt.s32.totalorder %s23, 1
        %s324 = scalar_select %p323, %s23, 1
        %s325 = scalar_lea.vmem %s6, %s324
        %p326 = scmp.lt.s32.totalorder %s23, 1
        %s327 = scalar_select %p326, %s23, 1
        %s328 = smul.addr %s327, 2
        %s329 = scalar_lea.vmem %s7, %s328
        %v331 = vld [vmem:[%s321] sm:$0xf]
        %v332 = vld [vmem:[%s321 + $0x4] sm:$0xf]
        %v333 = vld [vmem:[%s321 + $0x8] sm:$0xf]
        %v334 = vld [vmem:[%s321 + $0xc] sm:$0xf]
        %v335 = vld [vmem:[%s321 + $0x10] sm:$0xf]
        %v336 = vld [vmem:[%s321 + $0x14] sm:$0xf]
        %v337 = vld [vmem:[%s321 + $0x18] sm:$0xf]
        %v338 = vld [vmem:[%s321 + $0x1c] sm:$0xf]
        %v339 = vld [vmem:[%s321 + $0x20] sm:$0xf]
        %v340 = vld [vmem:[%s321 + $0x24] sm:$0xf]
        %v341 = vld [vmem:[%s321 + $0x28] sm:$0xf]
        %v342 = vld [vmem:[%s321 + $0x2c] sm:$0xf]
        %v343 = vld [vmem:[%s321 + $0x30] sm:$0xf]
        %v344 = vld [vmem:[%s321 + $0x34] sm:$0xf]
        %v345 = vld [vmem:[%s321 + $0x38] sm:$0xf]
        %v346 = vld [vmem:[%s321 + $0x3c] sm:$0xf]
        %v347 = vld [vmem:[%s321 + $0x40] sm:$0xf]
        %v348 = vld [vmem:[%s321 + $0x44] sm:$0xf]
        %v349 = vld [vmem:[%s321 + $0x48] sm:$0xf]
        %v350 = vld [vmem:[%s321 + $0x4c] sm:$0xf]
        %v351 = vld [vmem:[%s321 + $0x50] sm:$0xf]
        %v352 = vld [vmem:[%s321 + $0x54] sm:$0xf]
        %v353 = vld [vmem:[%s321 + $0x58] sm:$0xf]
        %v354 = vld [vmem:[%s321 + $0x5c] sm:$0xf]
        %v355 = vld [vmem:[%s321 + $0x60] sm:$0xf]
        %v356 = vld [vmem:[%s321 + $0x64] sm:$0xf]
        %v357 = vld [vmem:[%s321 + $0x68] sm:$0xf]
        %v358 = vld [vmem:[%s321 + $0x6c] sm:$0xf]
        %v359 = vld [vmem:[%s321 + $0x70] sm:$0xf]
        %v360 = vld [vmem:[%s321 + $0x74] sm:$0xf]
        %v361 = vld [vmem:[%s321 + $0x78] sm:$0xf]
        %v362 = vld [vmem:[%s321 + $0x7c] sm:$0xf]
        %v363 = vld [vmem:[%s1] sm:$0xff]
        %v364 = vld [vmem:[%s1 + $0x8] sm:$0xff]
        %v397 = vunpack.c.l.b16 %v331
        %v398 = vunpack.c.l.b16 %v332
        %v399 = vunpack.c.l.b16 %v333
        %v400 = vunpack.c.l.b16 %v334
        %v401 = vunpack.c.l.b16 %v335
        %v402 = vunpack.c.l.b16 %v336
        %v403 = vunpack.c.l.b16 %v337
        %v404 = vunpack.c.l.b16 %v338
        %v405 = vunpack.c.l.b16 %v339
        %v406 = vunpack.c.l.b16 %v340
        %v407 = vunpack.c.l.b16 %v341
        %v408 = vunpack.c.l.b16 %v342
        %v409 = vunpack.c.l.b16 %v343
        %v410 = vunpack.c.l.b16 %v344
        %v411 = vunpack.c.l.b16 %v345
        %v412 = vunpack.c.l.b16 %v346
        %v413 = vunpack.c.l.b16 %v347
        %v414 = vunpack.c.l.b16 %v348
        %v415 = vunpack.c.l.b16 %v349
        %v416 = vunpack.c.l.b16 %v350
        %v417 = vunpack.c.l.b16 %v351
        %v418 = vunpack.c.l.b16 %v352
        %v419 = vunpack.c.l.b16 %v353
        %v420 = vunpack.c.l.b16 %v354
        %v421 = vunpack.c.l.b16 %v355
        %v422 = vunpack.c.l.b16 %v356
        %v423 = vunpack.c.l.b16 %v357
        %v424 = vunpack.c.l.b16 %v358
        %v425 = vunpack.c.l.b16 %v359
        %v426 = vunpack.c.l.b16 %v360
        %v427 = vunpack.c.l.b16 %v361
        %v428 = vunpack.c.l.b16 %v362
        %v429 = vpack.c.b16 %v398, %v397
        %v430 = vpack.c.b16 %v400, %v399
        %v431 = vpack.c.b16 %v402, %v401
        %v432 = vpack.c.b16 %v404, %v403
        %v433 = vpack.c.b16 %v406, %v405
        %v434 = vpack.c.b16 %v408, %v407
        %v435 = vpack.c.b16 %v410, %v409
        %v436 = vpack.c.b16 %v412, %v411
        %v437 = vpack.c.b16 %v414, %v413
        %v438 = vpack.c.b16 %v416, %v415
        %v439 = vpack.c.b16 %v418, %v417
        %v440 = vpack.c.b16 %v420, %v419
        %v441 = vpack.c.b16 %v422, %v421
        %v442 = vpack.c.b16 %v424, %v423
        %v443 = vpack.c.b16 %v426, %v425
        %v444 = vpack.c.b16 %v428, %v427
        %v447 = vcombine.high %v363, %v363
        %v449 = vunpack.c.l.s4 1983009808
        %v450 = vunpack.c.0.s8 %v449
        %v451 = vlaneseq
        %v452 = vshrl.u32 %v451, 7
        %v453 = vsub.s32 %v450, %v452
        %v454 = vrot.slane %v363, %v453
        %v456 = vunpack.c.l.s4 1983009808
        %v457 = vunpack.c.0.s8 %v456
        %v458 = vlaneseq
        %v459 = vshrl.u32 %v458, 7
        %v460 = vsub.s32 %v457, %v459
        %v461 = vrot.slane %v447, %v460
        %v462 = vcombine.high %v454, %v454
        %v463 = vcombine.high %v461, %v461
        %v464 = vcombine.high %v364, %v364
        %v466 = vunpack.c.l.s4 1983009808
        %v467 = vunpack.c.0.s8 %v466
        %v468 = vlaneseq
        %v469 = vshrl.u32 %v468, 7
        %v470 = vsub.s32 %v467, %v469
        %v471 = vrot.slane %v364, %v470
        %v473 = vunpack.c.l.s4 1983009808
        %v474 = vunpack.c.0.s8 %v473
        %v475 = vlaneseq
        %v476 = vshrl.u32 %v475, 7
        %v477 = vsub.s32 %v474, %v476
        %v478 = vrot.slane %v464, %v477
        %v479 = vcombine.high %v471, %v471
        %v480 = vcombine.high %v478, %v478
        %vm481 = vcmask 31744
        %v483 = vsel %vm481, %v429, 0
        %v486 = vsel %vm481, %v430, 0
        %v489 = vsel %vm481, %v431, 0
        %v492 = vsel %vm481, %v432, 0
        %v495 = vsel %vm481, %v433, 0
        %v498 = vsel %vm481, %v434, 0
        %v501 = vsel %vm481, %v435, 0
        %v504 = vsel %vm481, %v436, 0
        %v507 = vsel %vm481, %v437, 0
        %v510 = vsel %vm481, %v438, 0
        %v513 = vsel %vm481, %v439, 0
        %v516 = vsel %vm481, %v440, 0
        %v519 = vsel %vm481, %v441, 0
        %v522 = vsel %vm481, %v442, 0
        %v525 = vsel %vm481, %v443, 0
        %v528 = vsel %vm481, %v444, 0
        %vm530 = vcmask 1041408
        %v532 = vsel %vm530, %v454, 0
        %v535 = vsel %vm530, %v462, 0
        %v538 = vsel %vm530, %v461, 0
        %v541 = vsel %vm530, %v463, 0
        %v544 = vsel %vm530, %v471, 0
        %v547 = vsel %vm530, %v479, 0
        %v550 = vsel %vm530, %v478, 0
        %v553 = vsel %vm530, %v480, 0
        %555 = vmatprep.subr.bf16.mxu0 0
        %556 = vmatpush1.bf16.msra.mxu0 0
        %557 = vmatprep.subr.bf16.mxu0 0
        %558 = vmatpush1.bf16.msra.mxu0 0
        %559 = vmatprep.subr.bf16.mxu0 0
        %560 = vmatpush1.bf16.msra.mxu0 0
        %561 = vmatprep.subr.bf16.mxu0 0
        %562 = vmatpush1.bf16.msra.mxu0 0
        %563 = vmatprep.subr.bf16.mxu0 0
        %564 = vmatpush1.bf16.msra.mxu0 0
        %565 = vmatprep.subr.bf16.mxu0 0
        %566 = vmatpush1.bf16.msra.mxu0 0
        %567 = vmatprep.subr.bf16.mxu0 0
        %568 = vmatpush1.bf16.msra.mxu0 0
        %569 = vmatprep.subr.bf16.mxu0 %v535
        %570 = vmatpush1.bf16.msra.mxu0 %v532
        %571 = vmatprep.subr.bf16.mxu0 0
        %572 = vmatpush2.bf16.msra.mxu0 0
        %573 = vmatprep.subr.bf16.mxu0 0
        %574 = vmatpush2.bf16.msra.mxu0 0
        %575 = vmatprep.subr.bf16.mxu0 0
        %576 = vmatpush2.bf16.msra.mxu0 0
        %577 = vmatprep.subr.bf16.mxu0 0
        %578 = vmatpush2.bf16.msra.mxu0 0
        %579 = vmatprep.subr.bf16.mxu0 0
        %580 = vmatpush2.bf16.msra.mxu0 0
        %581 = vmatprep.subr.bf16.mxu0 0
        %582 = vmatpush2.bf16.msra.mxu0 0
        %583 = vmatprep.subr.bf16.mxu0 0
        %584 = vmatpush2.bf16.msra.mxu0 0
        %585 = vmatprep.subr.bf16.mxu0 0
        %586 = vmatpush2.bf16.msra.mxu0 0
        %587 = vmatprep.mubr.bf16.mxu0 0
        %588 = vmatmul.mubr.bf16.gmra.mxu0 %v483
        %v589 = vpop.f32.mrf.mxu0
        %v590 = vadd.f32 0.0, %v589
        %v591 = vpop.f32.mrf.mxu0
        %v592 = vadd.f32 0.0, %v591
        %v593 = vpop.f32.mrf.mxu0
        %v594 = vadd.f32 0.0, %v593
        %v595 = vpop.f32.mrf.mxu0
        %v596 = vadd.f32 0.0, %v595
        %597 = vmatprep.mubr.bf16.mxu0 0
        %598 = vmatmul.mubr.bf16.gmra.mxu0 %v486
        %v599 = vpop.f32.mrf.mxu0
        %v600 = vadd.f32 0.0, %v599
        %v601 = vpop.f32.mrf.mxu0
        %v602 = vadd.f32 0.0, %v601
        %v603 = vpop.f32.mrf.mxu0
        %v604 = vadd.f32 0.0, %v603
        %v605 = vpop.f32.mrf.mxu0
        %v606 = vadd.f32 0.0, %v605
        %607 = vmatprep.mubr.bf16.mxu0 0
        %608 = vmatmul.mubr.bf16.gmra.mxu0 %v489
        %v609 = vpop.f32.mrf.mxu0
        %v610 = vadd.f32 0.0, %v609
        %v611 = vpop.f32.mrf.mxu0
        %v612 = vadd.f32 0.0, %v611
        %v613 = vpop.f32.mrf.mxu0
        %v614 = vadd.f32 0.0, %v613
        %v615 = vpop.f32.mrf.mxu0
        %v616 = vadd.f32 0.0, %v615
        %617 = vmatprep.mubr.bf16.mxu0 0
        %618 = vmatmul.mubr.bf16.gmra.mxu0 %v492
        %v619 = vpop.f32.mrf.mxu0
        %v620 = vadd.f32 0.0, %v619
        %v621 = vpop.f32.mrf.mxu0
        %v622 = vadd.f32 0.0, %v621
        %v623 = vpop.f32.mrf.mxu0
        %v624 = vadd.f32 0.0, %v623
        %v625 = vpop.f32.mrf.mxu0
        %v626 = vadd.f32 0.0, %v625
        %627 = vmatprep.mubr.bf16.mxu0 0
        %628 = vmatmul.mubr.bf16.gmra.mxu0 %v495
        %v629 = vpop.f32.mrf.mxu0
        %v630 = vadd.f32 0.0, %v629
        %v631 = vpop.f32.mrf.mxu0
        %v632 = vadd.f32 0.0, %v631
        %v633 = vpop.f32.mrf.mxu0
        %v634 = vadd.f32 0.0, %v633
        %v635 = vpop.f32.mrf.mxu0
        %v636 = vadd.f32 0.0, %v635
        %637 = vmatprep.mubr.bf16.mxu0 0
        %638 = vmatmul.mubr.bf16.gmra.mxu0 %v498
        %v639 = vpop.f32.mrf.mxu0
        %v640 = vadd.f32 0.0, %v639
        %v641 = vpop.f32.mrf.mxu0
        %v642 = vadd.f32 0.0, %v641
        %v643 = vpop.f32.mrf.mxu0
        %v644 = vadd.f32 0.0, %v643
        %v645 = vpop.f32.mrf.mxu0
        %v646 = vadd.f32 0.0, %v645
        %647 = vmatprep.mubr.bf16.mxu0 0
        %648 = vmatmul.mubr.bf16.gmra.mxu0 %v501
        %v649 = vpop.f32.mrf.mxu0
        %v650 = vadd.f32 0.0, %v649
        %v651 = vpop.f32.mrf.mxu0
        %v652 = vadd.f32 0.0, %v651
        %v653 = vpop.f32.mrf.mxu0
        %v654 = vadd.f32 0.0, %v653
        %v655 = vpop.f32.mrf.mxu0
        %v656 = vadd.f32 0.0, %v655
        %657 = vmatprep.mubr.bf16.mxu0 0
        %658 = vmatmul.mubr.bf16.gmra.mxu0 %v504
        %v659 = vpop.f32.mrf.mxu0
        %v660 = vadd.f32 0.0, %v659
        %v661 = vpop.f32.mrf.mxu0
        %v662 = vadd.f32 0.0, %v661
        %v663 = vpop.f32.mrf.mxu0
        %v664 = vadd.f32 0.0, %v663
        %v665 = vpop.f32.mrf.mxu0
        %v666 = vadd.f32 0.0, %v665
        %667 = vmatprep.mubr.bf16.mxu0 0
        %668 = vmatmul.mubr.bf16.gmra.mxu0 %v507
        %v669 = vpop.f32.mrf.mxu0
        %v670 = vadd.f32 0.0, %v669
        %v671 = vpop.f32.mrf.mxu0
        %v672 = vadd.f32 0.0, %v671
        %v673 = vpop.f32.mrf.mxu0
        %v674 = vadd.f32 0.0, %v673
        %v675 = vpop.f32.mrf.mxu0
        %v676 = vadd.f32 0.0, %v675
        %677 = vmatprep.mubr.bf16.mxu0 0
        %678 = vmatmul.mubr.bf16.gmra.mxu0 %v510
        %v679 = vpop.f32.mrf.mxu0
        %v680 = vadd.f32 0.0, %v679
        %v681 = vpop.f32.mrf.mxu0
        %v682 = vadd.f32 0.0, %v681
        %v683 = vpop.f32.mrf.mxu0
        %v684 = vadd.f32 0.0, %v683
        %v685 = vpop.f32.mrf.mxu0
        %v686 = vadd.f32 0.0, %v685
        %687 = vmatprep.mubr.bf16.mxu0 0
        %688 = vmatmul.mubr.bf16.gmra.mxu0 %v513
        %v689 = vpop.f32.mrf.mxu0
        %v690 = vadd.f32 0.0, %v689
        %v691 = vpop.f32.mrf.mxu0
        %v692 = vadd.f32 0.0, %v691
        %v693 = vpop.f32.mrf.mxu0
        %v694 = vadd.f32 0.0, %v693
        %v695 = vpop.f32.mrf.mxu0
        %v696 = vadd.f32 0.0, %v695
        %697 = vmatprep.mubr.bf16.mxu0 0
        %698 = vmatmul.mubr.bf16.gmra.mxu0 %v516
        %v699 = vpop.f32.mrf.mxu0
        %v700 = vadd.f32 0.0, %v699
        %v701 = vpop.f32.mrf.mxu0
        %v702 = vadd.f32 0.0, %v701
        %v703 = vpop.f32.mrf.mxu0
        %v704 = vadd.f32 0.0, %v703
        %v705 = vpop.f32.mrf.mxu0
        %v706 = vadd.f32 0.0, %v705
        %707 = vmatprep.mubr.bf16.mxu0 0
        %708 = vmatmul.mubr.bf16.gmra.mxu0 %v519
        %v709 = vpop.f32.mrf.mxu0
        %v710 = vadd.f32 0.0, %v709
        %v711 = vpop.f32.mrf.mxu0
        %v712 = vadd.f32 0.0, %v711
        %v713 = vpop.f32.mrf.mxu0
        %v714 = vadd.f32 0.0, %v713
        %v715 = vpop.f32.mrf.mxu0
        %v716 = vadd.f32 0.0, %v715
        %717 = vmatprep.mubr.bf16.mxu0 0
        %718 = vmatmul.mubr.bf16.gmra.mxu0 %v522
        %v719 = vpop.f32.mrf.mxu0
        %v720 = vadd.f32 0.0, %v719
        %v721 = vpop.f32.mrf.mxu0
        %v722 = vadd.f32 0.0, %v721
        %v723 = vpop.f32.mrf.mxu0
        %v724 = vadd.f32 0.0, %v723
        %v725 = vpop.f32.mrf.mxu0
        %v726 = vadd.f32 0.0, %v725
        %727 = vmatprep.mubr.bf16.mxu0 0
        %728 = vmatmul.mubr.bf16.gmra.mxu0 %v525
        %v729 = vpop.f32.mrf.mxu0
        %v730 = vadd.f32 0.0, %v729
        %v731 = vpop.f32.mrf.mxu0
        %v732 = vadd.f32 0.0, %v731
        %v733 = vpop.f32.mrf.mxu0
        %v734 = vadd.f32 0.0, %v733
        %v735 = vpop.f32.mrf.mxu0
        %v736 = vadd.f32 0.0, %v735
        %737 = vmatprep.mubr.bf16.mxu0 0
        %738 = vmatmul.mubr.bf16.gmra.mxu0 %v528
        %v739 = vpop.f32.mrf.mxu0
        %v740 = vadd.f32 0.0, %v739
        %v741 = vpop.f32.mrf.mxu0
        %v742 = vadd.f32 0.0, %v741
        %v743 = vpop.f32.mrf.mxu0
        %v744 = vadd.f32 0.0, %v743
        %v745 = vpop.f32.mrf.mxu0
        %v746 = vadd.f32 0.0, %v745
        %747 = vdwg.mxu0
        %748 = vmatprep.subr.bf16.mxu0 0
        %749 = vmatpush1.bf16.msra.mxu0 0
        %750 = vmatprep.subr.bf16.mxu0 0
        %751 = vmatpush1.bf16.msra.mxu0 0
        %752 = vmatprep.subr.bf16.mxu0 0
        %753 = vmatpush1.bf16.msra.mxu0 0
        %754 = vmatprep.subr.bf16.mxu0 0
        %755 = vmatpush1.bf16.msra.mxu0 0
        %756 = vmatprep.subr.bf16.mxu0 0
        %757 = vmatpush1.bf16.msra.mxu0 0
        %758 = vmatprep.subr.bf16.mxu0 0
        %759 = vmatpush1.bf16.msra.mxu0 0
        %760 = vmatprep.subr.bf16.mxu0 0
        %761 = vmatpush1.bf16.msra.mxu0 0
        %762 = vmatprep.subr.bf16.mxu0 %v541
        %763 = vmatpush1.bf16.msra.mxu0 %v538
        %764 = vmatprep.subr.bf16.mxu0 0
        %765 = vmatpush2.bf16.msra.mxu0 0
        %766 = vmatprep.subr.bf16.mxu0 0
        %767 = vmatpush2.bf16.msra.mxu0 0
        %768 = vmatprep.subr.bf16.mxu0 0
        %769 = vmatpush2.bf16.msra.mxu0 0
        %770 = vmatprep.subr.bf16.mxu0 0
        %771 = vmatpush2.bf16.msra.mxu0 0
        %772 = vmatprep.subr.bf16.mxu0 0
        %773 = vmatpush2.bf16.msra.mxu0 0
        %774 = vmatprep.subr.bf16.mxu0 0
        %775 = vmatpush2.bf16.msra.mxu0 0
        %776 = vmatprep.subr.bf16.mxu0 0
        %777 = vmatpush2.bf16.msra.mxu0 0
        %778 = vmatprep.subr.bf16.mxu0 0
        %779 = vmatpush2.bf16.msra.mxu0 0
        %780 = vmatprep.mubr.bf16.mxu0 0
        %781 = vmatmul.mubr.bf16.gmra.mxu0 %v483
        %v782 = vpop.f32.mrf.mxu0
        %v783 = vadd.f32 0.0, %v782
        %v784 = vpop.f32.mrf.mxu0
        %v785 = vadd.f32 0.0, %v784
        %v786 = vpop.f32.mrf.mxu0
        %v787 = vadd.f32 0.0, %v786
        %v788 = vpop.f32.mrf.mxu0
        %v789 = vadd.f32 0.0, %v788
        %790 = vmatprep.mubr.bf16.mxu0 0
        %791 = vmatmul.mubr.bf16.gmra.mxu0 %v486
        %v792 = vpop.f32.mrf.mxu0
        %v793 = vadd.f32 0.0, %v792
        %v794 = vpop.f32.mrf.mxu0
        %v795 = vadd.f32 0.0, %v794
        %v796 = vpop.f32.mrf.mxu0
        %v797 = vadd.f32 0.0, %v796
        %v798 = vpop.f32.mrf.mxu0
        %v799 = vadd.f32 0.0, %v798
        %800 = vmatprep.mubr.bf16.mxu0 0
        %801 = vmatmul.mubr.bf16.gmra.mxu0 %v489
        %v802 = vpop.f32.mrf.mxu0
        %v803 = vadd.f32 0.0, %v802
        %v804 = vpop.f32.mrf.mxu0
        %v805 = vadd.f32 0.0, %v804
        %v806 = vpop.f32.mrf.mxu0
        %v807 = vadd.f32 0.0, %v806
        %v808 = vpop.f32.mrf.mxu0
        %v809 = vadd.f32 0.0, %v808
        %810 = vmatprep.mubr.bf16.mxu0 0
        %811 = vmatmul.mubr.bf16.gmra.mxu0 %v492
        %v812 = vpop.f32.mrf.mxu0
        %v813 = vadd.f32 0.0, %v812
        %v814 = vpop.f32.mrf.mxu0
        %v815 = vadd.f32 0.0, %v814
        %v816 = vpop.f32.mrf.mxu0
        %v817 = vadd.f32 0.0, %v816
        %v818 = vpop.f32.mrf.mxu0
        %v819 = vadd.f32 0.0, %v818
        %820 = vmatprep.mubr.bf16.mxu0 0
        %821 = vmatmul.mubr.bf16.gmra.mxu0 %v495
        %v822 = vpop.f32.mrf.mxu0
        %v823 = vadd.f32 0.0, %v822
        %v824 = vpop.f32.mrf.mxu0
        %v825 = vadd.f32 0.0, %v824
        %v826 = vpop.f32.mrf.mxu0
        %v827 = vadd.f32 0.0, %v826
        %v828 = vpop.f32.mrf.mxu0
        %v829 = vadd.f32 0.0, %v828
        %830 = vmatprep.mubr.bf16.mxu0 0
        %831 = vmatmul.mubr.bf16.gmra.mxu0 %v498
        %v832 = vpop.f32.mrf.mxu0
        %v833 = vadd.f32 0.0, %v832
        %v834 = vpop.f32.mrf.mxu0
        %v835 = vadd.f32 0.0, %v834
        %v836 = vpop.f32.mrf.mxu0
        %v837 = vadd.f32 0.0, %v836
        %v838 = vpop.f32.mrf.mxu0
        %v839 = vadd.f32 0.0, %v838
        %840 = vmatprep.mubr.bf16.mxu0 0
        %841 = vmatmul.mubr.bf16.gmra.mxu0 %v501
        %v842 = vpop.f32.mrf.mxu0
        %v843 = vadd.f32 0.0, %v842
        %v844 = vpop.f32.mrf.mxu0
        %v845 = vadd.f32 0.0, %v844
        %v846 = vpop.f32.mrf.mxu0
        %v847 = vadd.f32 0.0, %v846
        %v848 = vpop.f32.mrf.mxu0
        %v849 = vadd.f32 0.0, %v848
        %850 = vmatprep.mubr.bf16.mxu0 0
        %851 = vmatmul.mubr.bf16.gmra.mxu0 %v504
        %v852 = vpop.f32.mrf.mxu0
        %v853 = vadd.f32 0.0, %v852
        %v854 = vpop.f32.mrf.mxu0
        %v855 = vadd.f32 0.0, %v854
        %v856 = vpop.f32.mrf.mxu0
        %v857 = vadd.f32 0.0, %v856
        %v858 = vpop.f32.mrf.mxu0
        %v859 = vadd.f32 0.0, %v858
        %860 = vmatprep.mubr.bf16.mxu0 0
        %861 = vmatmul.mubr.bf16.gmra.mxu0 %v507
        %v862 = vpop.f32.mrf.mxu0
        %v863 = vadd.f32 0.0, %v862
        %v864 = vpop.f32.mrf.mxu0
        %v865 = vadd.f32 0.0, %v864
        %v866 = vpop.f32.mrf.mxu0
        %v867 = vadd.f32 0.0, %v866
        %v868 = vpop.f32.mrf.mxu0
        %v869 = vadd.f32 0.0, %v868
        %870 = vmatprep.mubr.bf16.mxu0 0
        %871 = vmatmul.mubr.bf16.gmra.mxu0 %v510
        %v872 = vpop.f32.mrf.mxu0
        %v873 = vadd.f32 0.0, %v872
        %v874 = vpop.f32.mrf.mxu0
        %v875 = vadd.f32 0.0, %v874
        %v876 = vpop.f32.mrf.mxu0
        %v877 = vadd.f32 0.0, %v876
        %v878 = vpop.f32.mrf.mxu0
        %v879 = vadd.f32 0.0, %v878
        %880 = vmatprep.mubr.bf16.mxu0 0
        %881 = vmatmul.mubr.bf16.gmra.mxu0 %v513
        %v882 = vpop.f32.mrf.mxu0
        %v883 = vadd.f32 0.0, %v882
        %v884 = vpop.f32.mrf.mxu0
        %v885 = vadd.f32 0.0, %v884
        %v886 = vpop.f32.mrf.mxu0
        %v887 = vadd.f32 0.0, %v886
        %v888 = vpop.f32.mrf.mxu0
        %v889 = vadd.f32 0.0, %v888
        %890 = vmatprep.mubr.bf16.mxu0 0
        %891 = vmatmul.mubr.bf16.gmra.mxu0 %v516
        %v892 = vpop.f32.mrf.mxu0
        %v893 = vadd.f32 0.0, %v892
        %v894 = vpop.f32.mrf.mxu0
        %v895 = vadd.f32 0.0, %v894
        %v896 = vpop.f32.mrf.mxu0
        %v897 = vadd.f32 0.0, %v896
        %v898 = vpop.f32.mrf.mxu0
        %v899 = vadd.f32 0.0, %v898
        %900 = vmatprep.mubr.bf16.mxu0 0
        %901 = vmatmul.mubr.bf16.gmra.mxu0 %v519
        %v902 = vpop.f32.mrf.mxu0
        %v903 = vadd.f32 0.0, %v902
        %v904 = vpop.f32.mrf.mxu0
        %v905 = vadd.f32 0.0, %v904
        %v906 = vpop.f32.mrf.mxu0
        %v907 = vadd.f32 0.0, %v906
        %v908 = vpop.f32.mrf.mxu0
        %v909 = vadd.f32 0.0, %v908
        %910 = vmatprep.mubr.bf16.mxu0 0
        %911 = vmatmul.mubr.bf16.gmra.mxu0 %v522
        %v912 = vpop.f32.mrf.mxu0
        %v913 = vadd.f32 0.0, %v912
        %v914 = vpop.f32.mrf.mxu0
        %v915 = vadd.f32 0.0, %v914
        %v916 = vpop.f32.mrf.mxu0
        %v917 = vadd.f32 0.0, %v916
        %v918 = vpop.f32.mrf.mxu0
        %v919 = vadd.f32 0.0, %v918
        %920 = vmatprep.mubr.bf16.mxu0 0
        %921 = vmatmul.mubr.bf16.gmra.mxu0 %v525
        %v922 = vpop.f32.mrf.mxu0
        %v923 = vadd.f32 0.0, %v922
        %v924 = vpop.f32.mrf.mxu0
        %v925 = vadd.f32 0.0, %v924
        %v926 = vpop.f32.mrf.mxu0
        %v927 = vadd.f32 0.0, %v926
        %v928 = vpop.f32.mrf.mxu0
        %v929 = vadd.f32 0.0, %v928
        %930 = vmatprep.mubr.bf16.mxu0 0
        %931 = vmatmul.mubr.bf16.gmra.mxu0 %v528
        %v932 = vpop.f32.mrf.mxu0
        %v933 = vadd.f32 0.0, %v932
        %v934 = vpop.f32.mrf.mxu0
        %v935 = vadd.f32 0.0, %v934
        %v936 = vpop.f32.mrf.mxu0
        %v937 = vadd.f32 0.0, %v936
        %v938 = vpop.f32.mrf.mxu0
        %v939 = vadd.f32 0.0, %v938
        %940 = vdwg.mxu0
        %941 = vmatprep.subr.bf16.mxu0 0
        %942 = vmatpush1.bf16.msra.mxu0 0
        %943 = vmatprep.subr.bf16.mxu0 0
        %944 = vmatpush1.bf16.msra.mxu0 0
        %945 = vmatprep.subr.bf16.mxu0 0
        %946 = vmatpush1.bf16.msra.mxu0 0
        %947 = vmatprep.subr.bf16.mxu0 0
        %948 = vmatpush1.bf16.msra.mxu0 0
        %949 = vmatprep.subr.bf16.mxu0 0
        %950 = vmatpush1.bf16.msra.mxu0 0
        %951 = vmatprep.subr.bf16.mxu0 0
        %952 = vmatpush1.bf16.msra.mxu0 0
        %953 = vmatprep.subr.bf16.mxu0 0
        %954 = vmatpush1.bf16.msra.mxu0 0
        %955 = vmatprep.subr.bf16.mxu0 %v547
        %956 = vmatpush1.bf16.msra.mxu0 %v544
        %957 = vmatprep.subr.bf16.mxu0 0
        %958 = vmatpush2.bf16.msra.mxu0 0
        %959 = vmatprep.subr.bf16.mxu0 0
        %960 = vmatpush2.bf16.msra.mxu0 0
        %961 = vmatprep.subr.bf16.mxu0 0
        %962 = vmatpush2.bf16.msra.mxu0 0
        %963 = vmatprep.subr.bf16.mxu0 0
        %964 = vmatpush2.bf16.msra.mxu0 0
        %965 = vmatprep.subr.bf16.mxu0 0
        %966 = vmatpush2.bf16.msra.mxu0 0
        %967 = vmatprep.subr.bf16.mxu0 0
        %968 = vmatpush2.bf16.msra.mxu0 0
        %969 = vmatprep.subr.bf16.mxu0 0
        %970 = vmatpush2.bf16.msra.mxu0 0
        %971 = vmatprep.subr.bf16.mxu0 0
        %972 = vmatpush2.bf16.msra.mxu0 0
        %973 = vmatprep.mubr.bf16.mxu0 0
        %974 = vmatmul.mubr.bf16.gmra.mxu0 %v483
        %v975 = vpop.f32.mrf.mxu0
        %v976 = vadd.f32 0.0, %v975
        %v977 = vpop.f32.mrf.mxu0
        %v978 = vadd.f32 0.0, %v977
        %v979 = vpop.f32.mrf.mxu0
        %v980 = vadd.f32 0.0, %v979
        %v981 = vpop.f32.mrf.mxu0
        %v982 = vadd.f32 0.0, %v981
        %983 = vmatprep.mubr.bf16.mxu0 0
        %984 = vmatmul.mubr.bf16.gmra.mxu0 %v486
        %v985 = vpop.f32.mrf.mxu0
        %v986 = vadd.f32 0.0, %v985
        %v987 = vpop.f32.mrf.mxu0
        %v988 = vadd.f32 0.0, %v987
        %v989 = vpop.f32.mrf.mxu0
        %v990 = vadd.f32 0.0, %v989
        %v991 = vpop.f32.mrf.mxu0
        %v992 = vadd.f32 0.0, %v991
        %993 = vmatprep.mubr.bf16.mxu0 0
        %994 = vmatmul.mubr.bf16.gmra.mxu0 %v489
        %v995 = vpop.f32.mrf.mxu0
        %v996 = vadd.f32 0.0, %v995
        %v997 = vpop.f32.mrf.mxu0
        %v998 = vadd.f32 0.0, %v997
        %v999 = vpop.f32.mrf.mxu0
        %v1000 = vadd.f32 0.0, %v999
        %v1001 = vpop.f32.mrf.mxu0
        %v1002 = vadd.f32 0.0, %v1001
        %1003 = vmatprep.mubr.bf16.mxu0 0
        %1004 = vmatmul.mubr.bf16.gmra.mxu0 %v492
        %v1005 = vpop.f32.mrf.mxu0
        %v1006 = vadd.f32 0.0, %v1005
        %v1007 = vpop.f32.mrf.mxu0
        %v1008 = vadd.f32 0.0, %v1007
        %v1009 = vpop.f32.mrf.mxu0
        %v1010 = vadd.f32 0.0, %v1009
        %v1011 = vpop.f32.mrf.mxu0
        %v1012 = vadd.f32 0.0, %v1011
        %1013 = vmatprep.mubr.bf16.mxu0 0
        %1014 = vmatmul.mubr.bf16.gmra.mxu0 %v495
        %v1015 = vpop.f32.mrf.mxu0
        %v1016 = vadd.f32 0.0, %v1015
        %v1017 = vpop.f32.mrf.mxu0
        %v1018 = vadd.f32 0.0, %v1017
        %v1019 = vpop.f32.mrf.mxu0
        %v1020 = vadd.f32 0.0, %v1019
        %v1021 = vpop.f32.mrf.mxu0
        %v1022 = vadd.f32 0.0, %v1021
        %1023 = vmatprep.mubr.bf16.mxu0 0
        %1024 = vmatmul.mubr.bf16.gmra.mxu0 %v498
        %v1025 = vpop.f32.mrf.mxu0
        %v1026 = vadd.f32 0.0, %v1025
        %v1027 = vpop.f32.mrf.mxu0
        %v1028 = vadd.f32 0.0, %v1027
        %v1029 = vpop.f32.mrf.mxu0
        %v1030 = vadd.f32 0.0, %v1029
        %v1031 = vpop.f32.mrf.mxu0
        %v1032 = vadd.f32 0.0, %v1031
        %1033 = vmatprep.mubr.bf16.mxu0 0
        %1034 = vmatmul.mubr.bf16.gmra.mxu0 %v501
        %v1035 = vpop.f32.mrf.mxu0
        %v1036 = vadd.f32 0.0, %v1035
        %v1037 = vpop.f32.mrf.mxu0
        %v1038 = vadd.f32 0.0, %v1037
        %v1039 = vpop.f32.mrf.mxu0
        %v1040 = vadd.f32 0.0, %v1039
        %v1041 = vpop.f32.mrf.mxu0
        %v1042 = vadd.f32 0.0, %v1041
        %1043 = vmatprep.mubr.bf16.mxu0 0
        %1044 = vmatmul.mubr.bf16.gmra.mxu0 %v504
        %v1045 = vpop.f32.mrf.mxu0
        %v1046 = vadd.f32 0.0, %v1045
        %v1047 = vpop.f32.mrf.mxu0
        %v1048 = vadd.f32 0.0, %v1047
        %v1049 = vpop.f32.mrf.mxu0
        %v1050 = vadd.f32 0.0, %v1049
        %v1051 = vpop.f32.mrf.mxu0
        %v1052 = vadd.f32 0.0, %v1051
        %1053 = vmatprep.mubr.bf16.mxu0 0
        %1054 = vmatmul.mubr.bf16.gmra.mxu0 %v507
        %v1055 = vpop.f32.mrf.mxu0
        %v1056 = vadd.f32 0.0, %v1055
        %v1057 = vpop.f32.mrf.mxu0
        %v1058 = vadd.f32 0.0, %v1057
        %v1059 = vpop.f32.mrf.mxu0
        %v1060 = vadd.f32 0.0, %v1059
        %v1061 = vpop.f32.mrf.mxu0
        %v1062 = vadd.f32 0.0, %v1061
        %1063 = vmatprep.mubr.bf16.mxu0 0
        %1064 = vmatmul.mubr.bf16.gmra.mxu0 %v510
        %v1065 = vpop.f32.mrf.mxu0
        %v1066 = vadd.f32 0.0, %v1065
        %v1067 = vpop.f32.mrf.mxu0
        %v1068 = vadd.f32 0.0, %v1067
        %v1069 = vpop.f32.mrf.mxu0
        %v1070 = vadd.f32 0.0, %v1069
        %v1071 = vpop.f32.mrf.mxu0
        %v1072 = vadd.f32 0.0, %v1071
        %1073 = vmatprep.mubr.bf16.mxu0 0
        %1074 = vmatmul.mubr.bf16.gmra.mxu0 %v513
        %v1075 = vpop.f32.mrf.mxu0
        %v1076 = vadd.f32 0.0, %v1075
        %v1077 = vpop.f32.mrf.mxu0
        %v1078 = vadd.f32 0.0, %v1077
        %v1079 = vpop.f32.mrf.mxu0
        %v1080 = vadd.f32 0.0, %v1079
        %v1081 = vpop.f32.mrf.mxu0
        %v1082 = vadd.f32 0.0, %v1081
        %1083 = vmatprep.mubr.bf16.mxu0 0
        %1084 = vmatmul.mubr.bf16.gmra.mxu0 %v516
        %v1085 = vpop.f32.mrf.mxu0
        %v1086 = vadd.f32 0.0, %v1085
        %v1087 = vpop.f32.mrf.mxu0
        %v1088 = vadd.f32 0.0, %v1087
        %v1089 = vpop.f32.mrf.mxu0
        %v1090 = vadd.f32 0.0, %v1089
        %v1091 = vpop.f32.mrf.mxu0
        %v1092 = vadd.f32 0.0, %v1091
        %1093 = vmatprep.mubr.bf16.mxu0 0
        %1094 = vmatmul.mubr.bf16.gmra.mxu0 %v519
        %v1095 = vpop.f32.mrf.mxu0
        %v1096 = vadd.f32 0.0, %v1095
        %v1097 = vpop.f32.mrf.mxu0
        %v1098 = vadd.f32 0.0, %v1097
        %v1099 = vpop.f32.mrf.mxu0
        %v1100 = vadd.f32 0.0, %v1099
        %v1101 = vpop.f32.mrf.mxu0
        %v1102 = vadd.f32 0.0, %v1101
        %1103 = vmatprep.mubr.bf16.mxu0 0
        %1104 = vmatmul.mubr.bf16.gmra.mxu0 %v522
        %v1105 = vpop.f32.mrf.mxu0
        %v1106 = vadd.f32 0.0, %v1105
        %v1107 = vpop.f32.mrf.mxu0
        %v1108 = vadd.f32 0.0, %v1107
        %v1109 = vpop.f32.mrf.mxu0
        %v1110 = vadd.f32 0.0, %v1109
        %v1111 = vpop.f32.mrf.mxu0
        %v1112 = vadd.f32 0.0, %v1111
        %1113 = vmatprep.mubr.bf16.mxu0 0
        %1114 = vmatmul.mubr.bf16.gmra.mxu0 %v525
        %v1115 = vpop.f32.mrf.mxu0
        %v1116 = vadd.f32 0.0, %v1115
        %v1117 = vpop.f32.mrf.mxu0
        %v1118 = vadd.f32 0.0, %v1117
        %v1119 = vpop.f32.mrf.mxu0
        %v1120 = vadd.f32 0.0, %v1119
        %v1121 = vpop.f32.mrf.mxu0
        %v1122 = vadd.f32 0.0, %v1121
        %1123 = vmatprep.mubr.bf16.mxu0 0
        %1124 = vmatmul.mubr.bf16.gmra.mxu0 %v528
        %v1125 = vpop.f32.mrf.mxu0
        %v1126 = vadd.f32 0.0, %v1125
        %v1127 = vpop.f32.mrf.mxu0
        %v1128 = vadd.f32 0.0, %v1127
        %v1129 = vpop.f32.mrf.mxu0
        %v1130 = vadd.f32 0.0, %v1129
        %v1131 = vpop.f32.mrf.mxu0
        %v1132 = vadd.f32 0.0, %v1131
        %1133 = vdwg.mxu0
        %1134 = vmatprep.subr.bf16.mxu0 0
        %1135 = vmatpush1.bf16.msra.mxu0 0
        %1136 = vmatprep.subr.bf16.mxu0 0
        %1137 = vmatpush1.bf16.msra.mxu0 0
        %1138 = vmatprep.subr.bf16.mxu0 0
        %1139 = vmatpush1.bf16.msra.mxu0 0
        %1140 = vmatprep.subr.bf16.mxu0 0
        %1141 = vmatpush1.bf16.msra.mxu0 0
        %1142 = vmatprep.subr.bf16.mxu0 0
        %1143 = vmatpush1.bf16.msra.mxu0 0
        %1144 = vmatprep.subr.bf16.mxu0 0
        %1145 = vmatpush1.bf16.msra.mxu0 0
        %1146 = vmatprep.subr.bf16.mxu0 0
        %1147 = vmatpush1.bf16.msra.mxu0 0
        %1148 = vmatprep.subr.bf16.mxu0 %v553
        %1149 = vmatpush1.bf16.msra.mxu0 %v550
        %1150 = vmatprep.subr.bf16.mxu0 0
        %1151 = vmatpush2.bf16.msra.mxu0 0
        %1152 = vmatprep.subr.bf16.mxu0 0
        %1153 = vmatpush2.bf16.msra.mxu0 0
        %1154 = vmatprep.subr.bf16.mxu0 0
        %1155 = vmatpush2.bf16.msra.mxu0 0
        %1156 = vmatprep.subr.bf16.mxu0 0
        %1157 = vmatpush2.bf16.msra.mxu0 0
        %1158 = vmatprep.subr.bf16.mxu0 0
        %1159 = vmatpush2.bf16.msra.mxu0 0
        %1160 = vmatprep.subr.bf16.mxu0 0
        %1161 = vmatpush2.bf16.msra.mxu0 0
        %1162 = vmatprep.subr.bf16.mxu0 0
        %1163 = vmatpush2.bf16.msra.mxu0 0
        %1164 = vmatprep.subr.bf16.mxu0 0
        %1165 = vmatpush2.bf16.msra.mxu0 0
        %1166 = vmatprep.mubr.bf16.mxu0 0
        %1167 = vmatmul.mubr.bf16.gmra.mxu0 %v483
        %v1168 = vpop.f32.mrf.mxu0
        %v1169 = vadd.f32 0.0, %v1168
        %v1170 = vpop.f32.mrf.mxu0
        %v1171 = vadd.f32 0.0, %v1170
        %v1172 = vpop.f32.mrf.mxu0
        %v1173 = vadd.f32 0.0, %v1172
        %v1174 = vpop.f32.mrf.mxu0
        %v1175 = vadd.f32 0.0, %v1174
        %1176 = vmatprep.mubr.bf16.mxu0 0
        %1177 = vmatmul.mubr.bf16.gmra.mxu0 %v486
        %v1178 = vpop.f32.mrf.mxu0
        %v1179 = vadd.f32 0.0, %v1178
        %v1180 = vpop.f32.mrf.mxu0
        %v1181 = vadd.f32 0.0, %v1180
        %v1182 = vpop.f32.mrf.mxu0
        %v1183 = vadd.f32 0.0, %v1182
        %v1184 = vpop.f32.mrf.mxu0
        %v1185 = vadd.f32 0.0, %v1184
        %1186 = vmatprep.mubr.bf16.mxu0 0
        %1187 = vmatmul.mubr.bf16.gmra.mxu0 %v489
        %v1188 = vpop.f32.mrf.mxu0
        %v1189 = vadd.f32 0.0, %v1188
        %v1190 = vpop.f32.mrf.mxu0
        %v1191 = vadd.f32 0.0, %v1190
        %v1192 = vpop.f32.mrf.mxu0
        %v1193 = vadd.f32 0.0, %v1192
        %v1194 = vpop.f32.mrf.mxu0
        %v1195 = vadd.f32 0.0, %v1194
        %1196 = vmatprep.mubr.bf16.mxu0 0
        %1197 = vmatmul.mubr.bf16.gmra.mxu0 %v492
        %v1198 = vpop.f32.mrf.mxu0
        %v1199 = vadd.f32 0.0, %v1198
        %v1200 = vpop.f32.mrf.mxu0
        %v1201 = vadd.f32 0.0, %v1200
        %v1202 = vpop.f32.mrf.mxu0
        %v1203 = vadd.f32 0.0, %v1202
        %v1204 = vpop.f32.mrf.mxu0
        %v1205 = vadd.f32 0.0, %v1204
        %1206 = vmatprep.mubr.bf16.mxu0 0
        %1207 = vmatmul.mubr.bf16.gmra.mxu0 %v495
        %v1208 = vpop.f32.mrf.mxu0
        %v1209 = vadd.f32 0.0, %v1208
        %v1210 = vpop.f32.mrf.mxu0
        %v1211 = vadd.f32 0.0, %v1210
        %v1212 = vpop.f32.mrf.mxu0
        %v1213 = vadd.f32 0.0, %v1212
        %v1214 = vpop.f32.mrf.mxu0
        %v1215 = vadd.f32 0.0, %v1214
        %1216 = vmatprep.mubr.bf16.mxu0 0
        %1217 = vmatmul.mubr.bf16.gmra.mxu0 %v498
        %v1218 = vpop.f32.mrf.mxu0
        %v1219 = vadd.f32 0.0, %v1218
        %v1220 = vpop.f32.mrf.mxu0
        %v1221 = vadd.f32 0.0, %v1220
        %v1222 = vpop.f32.mrf.mxu0
        %v1223 = vadd.f32 0.0, %v1222
        %v1224 = vpop.f32.mrf.mxu0
        %v1225 = vadd.f32 0.0, %v1224
        %1226 = vmatprep.mubr.bf16.mxu0 0
        %1227 = vmatmul.mubr.bf16.gmra.mxu0 %v501
        %v1228 = vpop.f32.mrf.mxu0
        %v1229 = vadd.f32 0.0, %v1228
        %v1230 = vpop.f32.mrf.mxu0
        %v1231 = vadd.f32 0.0, %v1230
        %v1232 = vpop.f32.mrf.mxu0
        %v1233 = vadd.f32 0.0, %v1232
        %v1234 = vpop.f32.mrf.mxu0
        %v1235 = vadd.f32 0.0, %v1234
        %1236 = vmatprep.mubr.bf16.mxu0 0
        %1237 = vmatmul.mubr.bf16.gmra.mxu0 %v504
        %v1238 = vpop.f32.mrf.mxu0
        %v1239 = vadd.f32 0.0, %v1238
        %v1240 = vpop.f32.mrf.mxu0
        %v1241 = vadd.f32 0.0, %v1240
        %v1242 = vpop.f32.mrf.mxu0
        %v1243 = vadd.f32 0.0, %v1242
        %v1244 = vpop.f32.mrf.mxu0
        %v1245 = vadd.f32 0.0, %v1244
        %1246 = vmatprep.mubr.bf16.mxu0 0
        %1247 = vmatmul.mubr.bf16.gmra.mxu0 %v507
        %v1248 = vpop.f32.mrf.mxu0
        %v1249 = vadd.f32 0.0, %v1248
        %v1250 = vpop.f32.mrf.mxu0
        %v1251 = vadd.f32 0.0, %v1250
        %v1252 = vpop.f32.mrf.mxu0
        %v1253 = vadd.f32 0.0, %v1252
        %v1254 = vpop.f32.mrf.mxu0
        %v1255 = vadd.f32 0.0, %v1254
        %1256 = vmatprep.mubr.bf16.mxu0 0
        %1257 = vmatmul.mubr.bf16.gmra.mxu0 %v510
        %v1258 = vpop.f32.mrf.mxu0
        %v1259 = vadd.f32 0.0, %v1258
        %v1260 = vpop.f32.mrf.mxu0
        %v1261 = vadd.f32 0.0, %v1260
        %v1262 = vpop.f32.mrf.mxu0
        %v1263 = vadd.f32 0.0, %v1262
        %v1264 = vpop.f32.mrf.mxu0
        %v1265 = vadd.f32 0.0, %v1264
        %1266 = vmatprep.mubr.bf16.mxu0 0
        %1267 = vmatmul.mubr.bf16.gmra.mxu0 %v513
        %v1268 = vpop.f32.mrf.mxu0
        %v1269 = vadd.f32 0.0, %v1268
        %v1270 = vpop.f32.mrf.mxu0
        %v1271 = vadd.f32 0.0, %v1270
        %v1272 = vpop.f32.mrf.mxu0
        %v1273 = vadd.f32 0.0, %v1272
        %v1274 = vpop.f32.mrf.mxu0
        %v1275 = vadd.f32 0.0, %v1274
        %1276 = vmatprep.mubr.bf16.mxu0 0
        %1277 = vmatmul.mubr.bf16.gmra.mxu0 %v516
        %v1278 = vpop.f32.mrf.mxu0
        %v1279 = vadd.f32 0.0, %v1278
        %v1280 = vpop.f32.mrf.mxu0
        %v1281 = vadd.f32 0.0, %v1280
        %v1282 = vpop.f32.mrf.mxu0
        %v1283 = vadd.f32 0.0, %v1282
        %v1284 = vpop.f32.mrf.mxu0
        %v1285 = vadd.f32 0.0, %v1284
        %1286 = vmatprep.mubr.bf16.mxu0 0
        %1287 = vmatmul.mubr.bf16.gmra.mxu0 %v519
        %v1288 = vpop.f32.mrf.mxu0
        %v1289 = vadd.f32 0.0, %v1288
        %v1290 = vpop.f32.mrf.mxu0
        %v1291 = vadd.f32 0.0, %v1290
        %v1292 = vpop.f32.mrf.mxu0
        %v1293 = vadd.f32 0.0, %v1292
        %v1294 = vpop.f32.mrf.mxu0
        %v1295 = vadd.f32 0.0, %v1294
        %1296 = vmatprep.mubr.bf16.mxu0 0
        %1297 = vmatmul.mubr.bf16.gmra.mxu0 %v522
        %v1298 = vpop.f32.mrf.mxu0
        %v1299 = vadd.f32 0.0, %v1298
        %v1300 = vpop.f32.mrf.mxu0
        %v1301 = vadd.f32 0.0, %v1300
        %v1302 = vpop.f32.mrf.mxu0
        %v1303 = vadd.f32 0.0, %v1302
        %v1304 = vpop.f32.mrf.mxu0
        %v1305 = vadd.f32 0.0, %v1304
        %1306 = vmatprep.mubr.bf16.mxu0 0
        %1307 = vmatmul.mubr.bf16.gmra.mxu0 %v525
        %v1308 = vpop.f32.mrf.mxu0
        %v1309 = vadd.f32 0.0, %v1308
        %v1310 = vpop.f32.mrf.mxu0
        %v1311 = vadd.f32 0.0, %v1310
        %v1312 = vpop.f32.mrf.mxu0
        %v1313 = vadd.f32 0.0, %v1312
        %v1314 = vpop.f32.mrf.mxu0
        %v1315 = vadd.f32 0.0, %v1314
        %1316 = vmatprep.mubr.bf16.mxu0 0
        %1317 = vmatmul.mubr.bf16.gmra.mxu0 %v528
        %v1318 = vpop.f32.mrf.mxu0
        %v1319 = vadd.f32 0.0, %v1318
        %v1320 = vpop.f32.mrf.mxu0
        %v1321 = vadd.f32 0.0, %v1320
        %v1322 = vpop.f32.mrf.mxu0
        %v1323 = vadd.f32 0.0, %v1322
        %v1324 = vpop.f32.mrf.mxu0
        %v1325 = vadd.f32 0.0, %v1324
        %1326 = vdwg.mxu0
        %v1327 = vmax.f32 %v590, 0.0
        %v1328 = vmax.f32 %v592, 0.0
        %v1329 = vmax.f32 %v783, 0.0
        %v1330 = vmax.f32 %v785, 0.0
        %v1331 = vmax.f32 %v976, 0.0
        %v1332 = vmax.f32 %v978, 0.0
        %v1333 = vmax.f32 %v1169, 0.0
        %v1334 = vmax.f32 %v1171, 0.0
        %v1335 = vmax.f32 %v594, 0.0
        %v1336 = vmax.f32 %v596, 0.0
        %v1337 = vmax.f32 %v787, 0.0
        %v1338 = vmax.f32 %v789, 0.0
        %v1339 = vmax.f32 %v980, 0.0
        %v1340 = vmax.f32 %v982, 0.0
        %v1341 = vmax.f32 %v1173, 0.0
        %v1342 = vmax.f32 %v1175, 0.0
        %v1343 = vmax.f32 %v600, 0.0
        %v1344 = vmax.f32 %v602, 0.0
        %v1345 = vmax.f32 %v793, 0.0
        %v1346 = vmax.f32 %v795, 0.0
        %v1347 = vmax.f32 %v986, 0.0
        %v1348 = vmax.f32 %v988, 0.0
        %v1349 = vmax.f32 %v1179, 0.0
        %v1350 = vmax.f32 %v1181, 0.0
        %v1351 = vmax.f32 %v604, 0.0
        %v1352 = vmax.f32 %v606, 0.0
        %v1353 = vmax.f32 %v797, 0.0
        %v1354 = vmax.f32 %v799, 0.0
        %v1355 = vmax.f32 %v990, 0.0
        %v1356 = vmax.f32 %v992, 0.0
        %v1357 = vmax.f32 %v1183, 0.0
        %v1358 = vmax.f32 %v1185, 0.0
        %v1359 = vmax.f32 %v610, 0.0
        %v1360 = vmax.f32 %v612, 0.0
        %v1361 = vmax.f32 %v803, 0.0
        %v1362 = vmax.f32 %v805, 0.0
        %v1363 = vmax.f32 %v996, 0.0
        %v1364 = vmax.f32 %v998, 0.0
        %v1365 = vmax.f32 %v1189, 0.0
        %v1366 = vmax.f32 %v1191, 0.0
        %v1367 = vmax.f32 %v614, 0.0
        %v1368 = vmax.f32 %v616, 0.0
        %v1369 = vmax.f32 %v807, 0.0
        %v1370 = vmax.f32 %v809, 0.0
        %v1371 = vmax.f32 %v1000, 0.0
        %v1372 = vmax.f32 %v1002, 0.0
        %v1373 = vmax.f32 %v1193, 0.0
        %v1374 = vmax.f32 %v1195, 0.0
        %v1375 = vmax.f32 %v620, 0.0
        %v1376 = vmax.f32 %v622, 0.0
        %v1377 = vmax.f32 %v813, 0.0
        %v1378 = vmax.f32 %v815, 0.0
        %v1379 = vmax.f32 %v1006, 0.0
        %v1380 = vmax.f32 %v1008, 0.0
        %v1381 = vmax.f32 %v1199, 0.0
        %v1382 = vmax.f32 %v1201, 0.0
        %v1383 = vmax.f32 %v624, 0.0
        %v1384 = vmax.f32 %v626, 0.0
        %v1385 = vmax.f32 %v817, 0.0
        %v1386 = vmax.f32 %v819, 0.0
        %v1387 = vmax.f32 %v1010, 0.0
        %v1388 = vmax.f32 %v1012, 0.0
        %v1389 = vmax.f32 %v1203, 0.0
        %v1390 = vmax.f32 %v1205, 0.0
        %v1391 = vmax.f32 %v630, 0.0
        %v1392 = vmax.f32 %v632, 0.0
        %v1393 = vmax.f32 %v823, 0.0
        %v1394 = vmax.f32 %v825, 0.0
        %v1395 = vmax.f32 %v1016, 0.0
        %v1396 = vmax.f32 %v1018, 0.0
        %v1397 = vmax.f32 %v1209, 0.0
        %v1398 = vmax.f32 %v1211, 0.0
        %v1399 = vmax.f32 %v634, 0.0
        %v1400 = vmax.f32 %v636, 0.0
        %v1401 = vmax.f32 %v827, 0.0
        %v1402 = vmax.f32 %v829, 0.0
        %v1403 = vmax.f32 %v1020, 0.0
        %v1404 = vmax.f32 %v1022, 0.0
        %v1405 = vmax.f32 %v1213, 0.0
        %v1406 = vmax.f32 %v1215, 0.0
        %v1407 = vmax.f32 %v640, 0.0
        %v1408 = vmax.f32 %v642, 0.0
        %v1409 = vmax.f32 %v833, 0.0
        %v1410 = vmax.f32 %v835, 0.0
        %v1411 = vmax.f32 %v1026, 0.0
        %v1412 = vmax.f32 %v1028, 0.0
        %v1413 = vmax.f32 %v1219, 0.0
        %v1414 = vmax.f32 %v1221, 0.0
        %v1415 = vmax.f32 %v644, 0.0
        %v1416 = vmax.f32 %v646, 0.0
        %v1417 = vmax.f32 %v837, 0.0
        %v1418 = vmax.f32 %v839, 0.0
        %v1419 = vmax.f32 %v1030, 0.0
        %v1420 = vmax.f32 %v1032, 0.0
        %v1421 = vmax.f32 %v1223, 0.0
        %v1422 = vmax.f32 %v1225, 0.0
        %v1423 = vmax.f32 %v650, 0.0
        %v1424 = vmax.f32 %v652, 0.0
        %v1425 = vmax.f32 %v843, 0.0
        %v1426 = vmax.f32 %v845, 0.0
        %v1427 = vmax.f32 %v1036, 0.0
        %v1428 = vmax.f32 %v1038, 0.0
        %v1429 = vmax.f32 %v1229, 0.0
        %v1430 = vmax.f32 %v1231, 0.0
        %v1431 = vmax.f32 %v654, 0.0
        %v1432 = vmax.f32 %v656, 0.0
        %v1433 = vmax.f32 %v847, 0.0
        %v1434 = vmax.f32 %v849, 0.0
        %v1435 = vmax.f32 %v1040, 0.0
        %v1436 = vmax.f32 %v1042, 0.0
        %v1437 = vmax.f32 %v1233, 0.0
        %v1438 = vmax.f32 %v1235, 0.0
        %v1439 = vmax.f32 %v660, 0.0
        %v1440 = vmax.f32 %v662, 0.0
        %v1441 = vmax.f32 %v853, 0.0
        %v1442 = vmax.f32 %v855, 0.0
        %v1443 = vmax.f32 %v1046, 0.0
        %v1444 = vmax.f32 %v1048, 0.0
        %v1445 = vmax.f32 %v1239, 0.0
        %v1446 = vmax.f32 %v1241, 0.0
        %v1447 = vmax.f32 %v664, 0.0
        %v1448 = vmax.f32 %v666, 0.0
        %v1449 = vmax.f32 %v857, 0.0
        %v1450 = vmax.f32 %v859, 0.0
        %v1451 = vmax.f32 %v1050, 0.0
        %v1452 = vmax.f32 %v1052, 0.0
        %v1453 = vmax.f32 %v1243, 0.0
        %v1454 = vmax.f32 %v1245, 0.0
        %v1455 = vmax.f32 %v670, 0.0
        %v1456 = vmax.f32 %v672, 0.0
        %v1457 = vmax.f32 %v863, 0.0
        %v1458 = vmax.f32 %v865, 0.0
        %v1459 = vmax.f32 %v1056, 0.0
        %v1460 = vmax.f32 %v1058, 0.0
        %v1461 = vmax.f32 %v1249, 0.0
        %v1462 = vmax.f32 %v1251, 0.0
        %v1463 = vmax.f32 %v674, 0.0
        %v1464 = vmax.f32 %v676, 0.0
        %v1465 = vmax.f32 %v867, 0.0
        %v1466 = vmax.f32 %v869, 0.0
        %v1467 = vmax.f32 %v1060, 0.0
        %v1468 = vmax.f32 %v1062, 0.0
        %v1469 = vmax.f32 %v1253, 0.0
        %v1470 = vmax.f32 %v1255, 0.0
        %v1471 = vmax.f32 %v680, 0.0
        %v1472 = vmax.f32 %v682, 0.0
        %v1473 = vmax.f32 %v873, 0.0
        %v1474 = vmax.f32 %v875, 0.0
        %v1475 = vmax.f32 %v1066, 0.0
        %v1476 = vmax.f32 %v1068, 0.0
        %v1477 = vmax.f32 %v1259, 0.0
        %v1478 = vmax.f32 %v1261, 0.0
        %v1479 = vmax.f32 %v684, 0.0
        %v1480 = vmax.f32 %v686, 0.0
        %v1481 = vmax.f32 %v877, 0.0
        %v1482 = vmax.f32 %v879, 0.0
        %v1483 = vmax.f32 %v1070, 0.0
        %v1484 = vmax.f32 %v1072, 0.0
        %v1485 = vmax.f32 %v1263, 0.0
        %v1486 = vmax.f32 %v1265, 0.0
        %v1487 = vmax.f32 %v690, 0.0
        %v1488 = vmax.f32 %v692, 0.0
        %v1489 = vmax.f32 %v883, 0.0
        %v1490 = vmax.f32 %v885, 0.0
        %v1491 = vmax.f32 %v1076, 0.0
        %v1492 = vmax.f32 %v1078, 0.0
        %v1493 = vmax.f32 %v1269, 0.0
        %v1494 = vmax.f32 %v1271, 0.0
        %v1495 = vmax.f32 %v694, 0.0
        %v1496 = vmax.f32 %v696, 0.0
        %v1497 = vmax.f32 %v887, 0.0
        %v1498 = vmax.f32 %v889, 0.0
        %v1499 = vmax.f32 %v1080, 0.0
        %v1500 = vmax.f32 %v1082, 0.0
        %v1501 = vmax.f32 %v1273, 0.0
        %v1502 = vmax.f32 %v1275, 0.0
        %v1503 = vmax.f32 %v700, 0.0
        %v1504 = vmax.f32 %v702, 0.0
        %v1505 = vmax.f32 %v893, 0.0
        %v1506 = vmax.f32 %v895, 0.0
        %v1507 = vmax.f32 %v1086, 0.0
        %v1508 = vmax.f32 %v1088, 0.0
        %v1509 = vmax.f32 %v1279, 0.0
        %v1510 = vmax.f32 %v1281, 0.0
        %v1511 = vmax.f32 %v704, 0.0
        %v1512 = vmax.f32 %v706, 0.0
        %v1513 = vmax.f32 %v897, 0.0
        %v1514 = vmax.f32 %v899, 0.0
        %v1515 = vmax.f32 %v1090, 0.0
        %v1516 = vmax.f32 %v1092, 0.0
        %v1517 = vmax.f32 %v1283, 0.0
        %v1518 = vmax.f32 %v1285, 0.0
        %v1519 = vmax.f32 %v710, 0.0
        %v1520 = vmax.f32 %v712, 0.0
        %v1521 = vmax.f32 %v903, 0.0
        %v1522 = vmax.f32 %v905, 0.0
        %v1523 = vmax.f32 %v1096, 0.0
        %v1524 = vmax.f32 %v1098, 0.0
        %v1525 = vmax.f32 %v1289, 0.0
        %v1526 = vmax.f32 %v1291, 0.0
        %v1527 = vmax.f32 %v714, 0.0
        %v1528 = vmax.f32 %v716, 0.0
        %v1529 = vmax.f32 %v907, 0.0
        %v1530 = vmax.f32 %v909, 0.0
        %v1531 = vmax.f32 %v1100, 0.0
        %v1532 = vmax.f32 %v1102, 0.0
        %v1533 = vmax.f32 %v1293, 0.0
        %v1534 = vmax.f32 %v1295, 0.0
        %v1535 = vmax.f32 %v720, 0.0
        %v1536 = vmax.f32 %v722, 0.0
        %v1537 = vmax.f32 %v913, 0.0
        %v1538 = vmax.f32 %v915, 0.0
        %v1539 = vmax.f32 %v1106, 0.0
        %v1540 = vmax.f32 %v1108, 0.0
        %v1541 = vmax.f32 %v1299, 0.0
        %v1542 = vmax.f32 %v1301, 0.0
        %v1543 = vmax.f32 %v724, 0.0
        %v1544 = vmax.f32 %v726, 0.0
        %v1545 = vmax.f32 %v917, 0.0
        %v1546 = vmax.f32 %v919, 0.0
        %v1547 = vmax.f32 %v1110, 0.0
        %v1548 = vmax.f32 %v1112, 0.0
        %v1549 = vmax.f32 %v1303, 0.0
        %v1550 = vmax.f32 %v1305, 0.0
        %v1551 = vmax.f32 %v730, 0.0
        %v1552 = vmax.f32 %v732, 0.0
        %v1553 = vmax.f32 %v923, 0.0
        %v1554 = vmax.f32 %v925, 0.0
        %v1555 = vmax.f32 %v1116, 0.0
        %v1556 = vmax.f32 %v1118, 0.0
        %v1557 = vmax.f32 %v1309, 0.0
        %v1558 = vmax.f32 %v1311, 0.0
        %v1559 = vmax.f32 %v734, 0.0
        %v1560 = vmax.f32 %v736, 0.0
        %v1561 = vmax.f32 %v927, 0.0
        %v1562 = vmax.f32 %v929, 0.0
        %v1563 = vmax.f32 %v1120, 0.0
        %v1564 = vmax.f32 %v1122, 0.0
        %v1565 = vmax.f32 %v1313, 0.0
        %v1566 = vmax.f32 %v1315, 0.0
        %v1567 = vmax.f32 %v740, 0.0
        %v1568 = vmax.f32 %v742, 0.0
        %v1569 = vmax.f32 %v933, 0.0
        %v1570 = vmax.f32 %v935, 0.0
        %v1571 = vmax.f32 %v1126, 0.0
        %v1572 = vmax.f32 %v1128, 0.0
        %v1573 = vmax.f32 %v1319, 0.0
        %v1574 = vmax.f32 %v1321, 0.0
        %v1575 = vmax.f32 %v744, 0.0
        %v1576 = vmax.f32 %v746, 0.0
        %v1577 = vmax.f32 %v937, 0.0
        %v1578 = vmax.f32 %v939, 0.0
        %v1579 = vmax.f32 %v1130, 0.0
        %v1580 = vmax.f32 %v1132, 0.0
        %v1581 = vmax.f32 %v1323, 0.0
        %v1582 = vmax.f32 %v1325, 0.0
        %v1583 = vpack.c.bf16 %v1335, %v1327
        %v1584 = vpack.c.bf16 %v1336, %v1328
        %v1585 = vpack.c.bf16 %v1337, %v1329
        %v1586 = vpack.c.bf16 %v1338, %v1330
        %v1587 = vpack.c.bf16 %v1339, %v1331
        %v1588 = vpack.c.bf16 %v1340, %v1332
        %v1589 = vpack.c.bf16 %v1341, %v1333
        %v1590 = vpack.c.bf16 %v1342, %v1334
        %v1591 = vpack.c.bf16 %v1351, %v1343
        %v1592 = vpack.c.bf16 %v1352, %v1344
        %v1593 = vpack.c.bf16 %v1353, %v1345
        %v1594 = vpack.c.bf16 %v1354, %v1346
        %v1595 = vpack.c.bf16 %v1355, %v1347
        %v1596 = vpack.c.bf16 %v1356, %v1348
        %v1597 = vpack.c.bf16 %v1357, %v1349
        %v1598 = vpack.c.bf16 %v1358, %v1350
        %v1599 = vpack.c.bf16 %v1367, %v1359
        %v1600 = vpack.c.bf16 %v1368, %v1360
        %v1601 = vpack.c.bf16 %v1369, %v1361
        %v1602 = vpack.c.bf16 %v1370, %v1362
        %v1603 = vpack.c.bf16 %v1371, %v1363
        %v1604 = vpack.c.bf16 %v1372, %v1364
        %v1605 = vpack.c.bf16 %v1373, %v1365
        %v1606 = vpack.c.bf16 %v1374, %v1366
        %v1607 = vpack.c.bf16 %v1383, %v1375
        %v1608 = vpack.c.bf16 %v1384, %v1376
        %v1609 = vpack.c.bf16 %v1385, %v1377
        %v1610 = vpack.c.bf16 %v1386, %v1378
        %v1611 = vpack.c.bf16 %v1387, %v1379
        %v1612 = vpack.c.bf16 %v1388, %v1380
        %v1613 = vpack.c.bf16 %v1389, %v1381
        %v1614 = vpack.c.bf16 %v1390, %v1382
        %v1615 = vpack.c.bf16 %v1399, %v1391
        %v1616 = vpack.c.bf16 %v1400, %v1392
        %v1617 = vpack.c.bf16 %v1401, %v1393
        %v1618 = vpack.c.bf16 %v1402, %v1394
        %v1619 = vpack.c.bf16 %v1403, %v1395
        %v1620 = vpack.c.bf16 %v1404, %v1396
        %v1621 = vpack.c.bf16 %v1405, %v1397
        %v1622 = vpack.c.bf16 %v1406, %v1398
        %v1623 = vpack.c.bf16 %v1415, %v1407
        %v1624 = vpack.c.bf16 %v1416, %v1408
        %v1625 = vpack.c.bf16 %v1417, %v1409
        %v1626 = vpack.c.bf16 %v1418, %v1410
        %v1627 = vpack.c.bf16 %v1419, %v1411
        %v1628 = vpack.c.bf16 %v1420, %v1412
        %v1629 = vpack.c.bf16 %v1421, %v1413
        %v1630 = vpack.c.bf16 %v1422, %v1414
        %v1631 = vpack.c.bf16 %v1431, %v1423
        %v1632 = vpack.c.bf16 %v1432, %v1424
        %v1633 = vpack.c.bf16 %v1433, %v1425
        %v1634 = vpack.c.bf16 %v1434, %v1426
        %v1635 = vpack.c.bf16 %v1435, %v1427
        %v1636 = vpack.c.bf16 %v1436, %v1428
        %v1637 = vpack.c.bf16 %v1437, %v1429
        %v1638 = vpack.c.bf16 %v1438, %v1430
        %v1639 = vpack.c.bf16 %v1447, %v1439
        %v1640 = vpack.c.bf16 %v1448, %v1440
        %v1641 = vpack.c.bf16 %v1449, %v1441
        %v1642 = vpack.c.bf16 %v1450, %v1442
        %v1643 = vpack.c.bf16 %v1451, %v1443
        %v1644 = vpack.c.bf16 %v1452, %v1444
        %v1645 = vpack.c.bf16 %v1453, %v1445
        %v1646 = vpack.c.bf16 %v1454, %v1446
        %v1647 = vpack.c.bf16 %v1463, %v1455
        %v1648 = vpack.c.bf16 %v1464, %v1456
        %v1649 = vpack.c.bf16 %v1465, %v1457
        %v1650 = vpack.c.bf16 %v1466, %v1458
        %v1651 = vpack.c.bf16 %v1467, %v1459
        %v1652 = vpack.c.bf16 %v1468, %v1460
        %v1653 = vpack.c.bf16 %v1469, %v1461
        %v1654 = vpack.c.bf16 %v1470, %v1462
        %v1655 = vpack.c.bf16 %v1479, %v1471
        %v1656 = vpack.c.bf16 %v1480, %v1472
        %v1657 = vpack.c.bf16 %v1481, %v1473
        %v1658 = vpack.c.bf16 %v1482, %v1474
        %v1659 = vpack.c.bf16 %v1483, %v1475
        %v1660 = vpack.c.bf16 %v1484, %v1476
        %v1661 = vpack.c.bf16 %v1485, %v1477
        %v1662 = vpack.c.bf16 %v1486, %v1478
        %v1663 = vpack.c.bf16 %v1495, %v1487
        %v1664 = vpack.c.bf16 %v1496, %v1488
        %v1665 = vpack.c.bf16 %v1497, %v1489
        %v1666 = vpack.c.bf16 %v1498, %v1490
        %v1667 = vpack.c.bf16 %v1499, %v1491
        %v1668 = vpack.c.bf16 %v1500, %v1492
        %v1669 = vpack.c.bf16 %v1501, %v1493
        %v1670 = vpack.c.bf16 %v1502, %v1494
        %v1671 = vpack.c.bf16 %v1511, %v1503
        %v1672 = vpack.c.bf16 %v1512, %v1504
        %v1673 = vpack.c.bf16 %v1513, %v1505
        %v1674 = vpack.c.bf16 %v1514, %v1506
        %v1675 = vpack.c.bf16 %v1515, %v1507
        %v1676 = vpack.c.bf16 %v1516, %v1508
        %v1677 = vpack.c.bf16 %v1517, %v1509
        %v1678 = vpack.c.bf16 %v1518, %v1510
        %v1679 = vpack.c.bf16 %v1527, %v1519
        %v1680 = vpack.c.bf16 %v1528, %v1520
        %v1681 = vpack.c.bf16 %v1529, %v1521
        %v1682 = vpack.c.bf16 %v1530, %v1522
        %v1683 = vpack.c.bf16 %v1531, %v1523
        %v1684 = vpack.c.bf16 %v1532, %v1524
        %v1685 = vpack.c.bf16 %v1533, %v1525
        %v1686 = vpack.c.bf16 %v1534, %v1526
        %v1687 = vpack.c.bf16 %v1543, %v1535
        %v1688 = vpack.c.bf16 %v1544, %v1536
        %v1689 = vpack.c.bf16 %v1545, %v1537
        %v1690 = vpack.c.bf16 %v1546, %v1538
        %v1691 = vpack.c.bf16 %v1547, %v1539
        %v1692 = vpack.c.bf16 %v1548, %v1540
        %v1693 = vpack.c.bf16 %v1549, %v1541
        %v1694 = vpack.c.bf16 %v1550, %v1542
        %v1695 = vpack.c.bf16 %v1559, %v1551
        %v1696 = vpack.c.bf16 %v1560, %v1552
        %v1697 = vpack.c.bf16 %v1561, %v1553
        %v1698 = vpack.c.bf16 %v1562, %v1554
        %v1699 = vpack.c.bf16 %v1563, %v1555
        %v1700 = vpack.c.bf16 %v1564, %v1556
        %v1701 = vpack.c.bf16 %v1565, %v1557
        %v1702 = vpack.c.bf16 %v1566, %v1558
        %v1703 = vpack.c.bf16 %v1575, %v1567
        %v1704 = vpack.c.bf16 %v1576, %v1568
        %v1705 = vpack.c.bf16 %v1577, %v1569
        %v1706 = vpack.c.bf16 %v1578, %v1570
        %v1707 = vpack.c.bf16 %v1579, %v1571
        %v1708 = vpack.c.bf16 %v1580, %v1572
        %v1709 = vpack.c.bf16 %v1581, %v1573
        %v1710 = vpack.c.bf16 %v1582, %v1574
        %v1711 = vld [vmem:[%s2] sm:$0x3]
        %v1714 = vunpack.c.l.s4 1966171168
        %v1715 = vunpack.c.0.s8 %v1714
        %v1716 = vlaneseq
        %v1717 = vshrl.u32 %v1716, 7
        %v1718 = vsub.s32 %v1715, %v1717
        %v1719 = vrot.slane %v1711, %v1718
        %v1720 = vcombine.high %v1719, %v1719
        %v1722 = vunpack.c.l.s4 1966171168
        %v1723 = vunpack.c.0.s8 %v1722
        %v1724 = vlaneseq
        %v1725 = vshrl.u32 %v1724, 7
        %v1726 = vsub.s32 %v1723, %v1725
        %v1727 = vrot.slane %v1719, %v1726
        %v1729 = vunpack.c.l.s4 1966171168
        %v1730 = vunpack.c.0.s8 %v1729
        %v1731 = vlaneseq
        %v1732 = vshrl.u32 %v1731, 7
        %v1733 = vsub.s32 %v1730, %v1732
        %v1734 = vrot.slane %v1720, %v1733
        %1737 = vmatprep.subr.bf16.mxu0 %v1640
        %1738 = vmatpush1.bf16.msra.mxu0 %v1639
        %1739 = vmatprep.subr.bf16.mxu0 %v1632
        %1740 = vmatpush1.bf16.msra.mxu0 %v1631
        %1741 = vmatprep.subr.bf16.mxu0 %v1624
        %1742 = vmatpush1.bf16.msra.mxu0 %v1623
        %1743 = vmatprep.subr.bf16.mxu0 %v1616
        %1744 = vmatpush1.bf16.msra.mxu0 %v1615
        %1745 = vmatprep.subr.bf16.mxu0 %v1608
        %1746 = vmatpush1.bf16.msra.mxu0 %v1607
        %1747 = vmatprep.subr.bf16.mxu0 %v1600
        %1748 = vmatpush1.bf16.msra.mxu0 %v1599
        %1749 = vmatprep.subr.bf16.mxu0 %v1592
        %1750 = vmatpush1.bf16.msra.mxu0 %v1591
        %1751 = vmatprep.subr.bf16.mxu0 %v1584
        %1752 = vmatpush1.bf16.msra.mxu0 %v1583
        %1753 = vmatprep.subr.bf16.mxu0 %v1704
        %1754 = vmatpush2.bf16.msra.mxu0 %v1703
        %1755 = vmatprep.subr.bf16.mxu0 %v1696
        %1756 = vmatpush2.bf16.msra.mxu0 %v1695
        %1757 = vmatprep.subr.bf16.mxu0 %v1688
        %1758 = vmatpush2.bf16.msra.mxu0 %v1687
        %1759 = vmatprep.subr.bf16.mxu0 %v1680
        %1760 = vmatpush2.bf16.msra.mxu0 %v1679
        %1761 = vmatprep.subr.bf16.mxu0 %v1672
        %1762 = vmatpush2.bf16.msra.mxu0 %v1671
        %1763 = vmatprep.subr.bf16.mxu0 %v1664
        %1764 = vmatpush2.bf16.msra.mxu0 %v1663
        %1765 = vmatprep.subr.bf16.mxu0 %v1656
        %1766 = vmatpush2.bf16.msra.mxu0 %v1655
        %1767 = vmatprep.subr.bf16.mxu0 %v1648
        %1768 = vmatpush2.bf16.msra.mxu0 %v1647
        %1769 = vmatprep.mubr.bf16.mxu0 %v1734
        %1770 = vmatmul.mubr.bf16.gmra.mxu0 %v1727
        %v1771 = vpop.f32.mrf.mxu0
        %v1772 = vadd.f32 0.0, %v1771
        %v1773 = vpop.f32.mrf.mxu0
        %v1774 = vadd.f32 0.0, %v1773
        %v1775 = vpop.f32.mrf.mxu0
        %v1776 = vpop.f32.mrf.mxu0
        %1777 = vdwg.mxu0
        %1778 = vmatprep.subr.bf16.mxu0 %v1642
        %1779 = vmatpush1.bf16.msra.mxu0 %v1641
        %1780 = vmatprep.subr.bf16.mxu0 %v1634
        %1781 = vmatpush1.bf16.msra.mxu0 %v1633
        %1782 = vmatprep.subr.bf16.mxu0 %v1626
        %1783 = vmatpush1.bf16.msra.mxu0 %v1625
        %1784 = vmatprep.subr.bf16.mxu0 %v1618
        %1785 = vmatpush1.bf16.msra.mxu0 %v1617
        %1786 = vmatprep.subr.bf16.mxu0 %v1610
        %1787 = vmatpush1.bf16.msra.mxu0 %v1609
        %1788 = vmatprep.subr.bf16.mxu0 %v1602
        %1789 = vmatpush1.bf16.msra.mxu0 %v1601
        %1790 = vmatprep.subr.bf16.mxu0 %v1594
        %1791 = vmatpush1.bf16.msra.mxu0 %v1593
        %1792 = vmatprep.subr.bf16.mxu0 %v1586
        %1793 = vmatpush1.bf16.msra.mxu0 %v1585
        %1794 = vmatprep.subr.bf16.mxu0 %v1706
        %1795 = vmatpush2.bf16.msra.mxu0 %v1705
        %1796 = vmatprep.subr.bf16.mxu0 %v1698
        %1797 = vmatpush2.bf16.msra.mxu0 %v1697
        %1798 = vmatprep.subr.bf16.mxu0 %v1690
        %1799 = vmatpush2.bf16.msra.mxu0 %v1689
        %1800 = vmatprep.subr.bf16.mxu0 %v1682
        %1801 = vmatpush2.bf16.msra.mxu0 %v1681
        %1802 = vmatprep.subr.bf16.mxu0 %v1674
        %1803 = vmatpush2.bf16.msra.mxu0 %v1673
        %1804 = vmatprep.subr.bf16.mxu0 %v1666
        %1805 = vmatpush2.bf16.msra.mxu0 %v1665
        %1806 = vmatprep.subr.bf16.mxu0 %v1658
        %1807 = vmatpush2.bf16.msra.mxu0 %v1657
        %1808 = vmatprep.subr.bf16.mxu0 %v1650
        %1809 = vmatpush2.bf16.msra.mxu0 %v1649
        %1810 = vmatprep.mubr.bf16.mxu0 %v1734
        %1811 = vmatmul.mubr.bf16.gmra.mxu0 %v1727
        %v1812 = vpop.f32.mrf.mxu0
        %v1813 = vadd.f32 0.0, %v1812
        %v1814 = vpop.f32.mrf.mxu0
        %v1815 = vadd.f32 0.0, %v1814
        %v1816 = vpop.f32.mrf.mxu0
        %v1817 = vpop.f32.mrf.mxu0
        %1818 = vdwg.mxu0
        %1819 = vmatprep.subr.bf16.mxu0 %v1644
        %1820 = vmatpush1.bf16.msra.mxu0 %v1643
        %1821 = vmatprep.subr.bf16.mxu0 %v1636
        %1822 = vmatpush1.bf16.msra.mxu0 %v1635
        %1823 = vmatprep.subr.bf16.mxu0 %v1628
        %1824 = vmatpush1.bf16.msra.mxu0 %v1627
        %1825 = vmatprep.subr.bf16.mxu0 %v1620
        %1826 = vmatpush1.bf16.msra.mxu0 %v1619
        %1827 = vmatprep.subr.bf16.mxu0 %v1612
        %1828 = vmatpush1.bf16.msra.mxu0 %v1611
        %1829 = vmatprep.subr.bf16.mxu0 %v1604
        %1830 = vmatpush1.bf16.msra.mxu0 %v1603
        %1831 = vmatprep.subr.bf16.mxu0 %v1596
        %1832 = vmatpush1.bf16.msra.mxu0 %v1595
        %1833 = vmatprep.subr.bf16.mxu0 %v1588
        %1834 = vmatpush1.bf16.msra.mxu0 %v1587
        %1835 = vmatprep.subr.bf16.mxu0 %v1708
        %1836 = vmatpush2.bf16.msra.mxu0 %v1707
        %1837 = vmatprep.subr.bf16.mxu0 %v1700
        %1838 = vmatpush2.bf16.msra.mxu0 %v1699
        %1839 = vmatprep.subr.bf16.mxu0 %v1692
        %1840 = vmatpush2.bf16.msra.mxu0 %v1691
        %1841 = vmatprep.subr.bf16.mxu0 %v1684
        %1842 = vmatpush2.bf16.msra.mxu0 %v1683
        %1843 = vmatprep.subr.bf16.mxu0 %v1676
        %1844 = vmatpush2.bf16.msra.mxu0 %v1675
        %1845 = vmatprep.subr.bf16.mxu0 %v1668
        %1846 = vmatpush2.bf16.msra.mxu0 %v1667
        %1847 = vmatprep.subr.bf16.mxu0 %v1660
        %1848 = vmatpush2.bf16.msra.mxu0 %v1659
        %1849 = vmatprep.subr.bf16.mxu0 %v1652
        %1850 = vmatpush2.bf16.msra.mxu0 %v1651
        %1851 = vmatprep.mubr.bf16.mxu0 %v1734
        %1852 = vmatmul.mubr.bf16.gmra.mxu0 %v1727
        %v1853 = vpop.f32.mrf.mxu0
        %v1854 = vadd.f32 0.0, %v1853
        %v1855 = vpop.f32.mrf.mxu0
        %v1856 = vadd.f32 0.0, %v1855
        %v1857 = vpop.f32.mrf.mxu0
        %v1858 = vpop.f32.mrf.mxu0
        %1859 = vdwg.mxu0
        %1860 = vmatprep.subr.bf16.mxu0 %v1646
        %1861 = vmatpush1.bf16.msra.mxu0 %v1645
        %1862 = vmatprep.subr.bf16.mxu0 %v1638
        %1863 = vmatpush1.bf16.msra.mxu0 %v1637
        %1864 = vmatprep.subr.bf16.mxu0 %v1630
        %1865 = vmatpush1.bf16.msra.mxu0 %v1629
        %1866 = vmatprep.subr.bf16.mxu0 %v1622
        %1867 = vmatpush1.bf16.msra.mxu0 %v1621
        %1868 = vmatprep.subr.bf16.mxu0 %v1614
        %1869 = vmatpush1.bf16.msra.mxu0 %v1613
        %1870 = vmatprep.subr.bf16.mxu0 %v1606
        %1871 = vmatpush1.bf16.msra.mxu0 %v1605
        %1872 = vmatprep.subr.bf16.mxu0 %v1598
        %1873 = vmatpush1.bf16.msra.mxu0 %v1597
        %1874 = vmatprep.subr.bf16.mxu0 %v1590
        %1875 = vmatpush1.bf16.msra.mxu0 %v1589
        %1876 = vmatprep.subr.bf16.mxu0 %v1710
        %1877 = vmatpush2.bf16.msra.mxu0 %v1709
        %1878 = vmatprep.subr.bf16.mxu0 %v1702
        %1879 = vmatpush2.bf16.msra.mxu0 %v1701
        %1880 = vmatprep.subr.bf16.mxu0 %v1694
        %1881 = vmatpush2.bf16.msra.mxu0 %v1693
        %1882 = vmatprep.subr.bf16.mxu0 %v1686
        %1883 = vmatpush2.bf16.msra.mxu0 %v1685
        %1884 = vmatprep.subr.bf16.mxu0 %v1678
        %1885 = vmatpush2.bf16.msra.mxu0 %v1677
        %1886 = vmatprep.subr.bf16.mxu0 %v1670
        %1887 = vmatpush2.bf16.msra.mxu0 %v1669
        %1888 = vmatprep.subr.bf16.mxu0 %v1662
        %1889 = vmatpush2.bf16.msra.mxu0 %v1661
        %1890 = vmatprep.subr.bf16.mxu0 %v1654
        %1891 = vmatpush2.bf16.msra.mxu0 %v1653
        %1892 = vmatprep.mubr.bf16.mxu0 %v1734
        %1893 = vmatmul.mubr.bf16.gmra.mxu0 %v1727
        %v1894 = vpop.f32.mrf.mxu0
        %v1895 = vadd.f32 0.0, %v1894
        %v1896 = vpop.f32.mrf.mxu0
        %v1897 = vadd.f32 0.0, %v1896
        %v1898 = vpop.f32.mrf.mxu0
        %v1899 = vpop.f32.mrf.mxu0
        %1900 = vdwg.mxu0
        %v1901 = vpack.c.bf16 %v1772, %v1772
        %v1902 = vpack.c.bf16 %v1774, %v1774
        %v1903 = vpack.c.bf16 %v1813, %v1813
        %v1904 = vpack.c.bf16 %v1815, %v1815
        %v1905 = vpack.c.bf16 %v1854, %v1854
        %v1906 = vpack.c.bf16 %v1856, %v1856
        %v1907 = vpack.c.bf16 %v1895, %v1895
        %v1908 = vpack.c.bf16 %v1897, %v1897
        %v1909 = vld [vmem:[%s3] sm:$0xff]
        %v1910 = vld [vmem:[%s3 + $0x8] sm:$0xff]
        %v1911 = vld [vmem:[%s3 + $0x10] sm:$0xff]
        %v1912 = vld [vmem:[%s3 + $0x18] sm:$0xff]
        %v1913 = vld [vmem:[%s3 + $0x20] sm:$0xff]
        %v1914 = vld [vmem:[%s3 + $0x28] sm:$0xff]
        %v1915 = vld [vmem:[%s3 + $0x30] sm:$0xff]
        %v1916 = vld [vmem:[%s3 + $0x38] sm:$0xff]
        %v1917 = vld [vmem:[%s3 + $0x40] sm:$0xff]
        %v1918 = vld [vmem:[%s3 + $0x48] sm:$0xff]
        %v1919 = vld [vmem:[%s3 + $0x50] sm:$0xff]
        %v1920 = vld [vmem:[%s3 + $0x58] sm:$0xff]
        %v1921 = vld [vmem:[%s3 + $0x60] sm:$0xff]
        %v1922 = vld [vmem:[%s3 + $0x68] sm:$0xff]
        %v1923 = vld [vmem:[%s3 + $0x70] sm:$0xff]
        %v1924 = vld [vmem:[%s3 + $0x78] sm:$0xff]
        %v1925 = vld [vmem:[%s3 + $0x80] sm:$0xff]
        %v1926 = vld [vmem:[%s3 + $0x88] sm:$0xff]
        %v1927 = vld [vmem:[%s3 + $0x90] sm:$0xff]
        %v1928 = vld [vmem:[%s3 + $0x98] sm:$0xff]
        %v1929 = vld [vmem:[%s3 + $0xa0] sm:$0xff]
        %v1930 = vld [vmem:[%s3 + $0xa8] sm:$0xff]
        %v1931 = vld [vmem:[%s3 + $0xb0] sm:$0xff]
        %v1932 = vld [vmem:[%s3 + $0xb8] sm:$0xff]
        %v1933 = vld [vmem:[%s3 + $0xc0] sm:$0xff]
        %v1934 = vld [vmem:[%s3 + $0xc8] sm:$0xff]
        %v1935 = vld [vmem:[%s3 + $0xd0] sm:$0xff]
        %v1936 = vld [vmem:[%s3 + $0xd8] sm:$0xff]
        %v1937 = vld [vmem:[%s3 + $0xe0] sm:$0xff]
        %v1938 = vld [vmem:[%s3 + $0xe8] sm:$0xff]
        %v1939 = vld [vmem:[%s3 + $0xf0] sm:$0xff]
        %v1940 = vld [vmem:[%s3 + $0xf8] sm:$0xff]
        %v1941 = vld [vmem:[%s3 + $0x100] sm:$0xff]
        %v1942 = vld [vmem:[%s3 + $0x108] sm:$0xff]
        %v1943 = vld [vmem:[%s3 + $0x110] sm:$0xff]
        %v1944 = vld [vmem:[%s3 + $0x118] sm:$0xff]
        %v1945 = vld [vmem:[%s3 + $0x120] sm:$0xff]
        %v1946 = vld [vmem:[%s3 + $0x128] sm:$0xff]
        %v1947 = vld [vmem:[%s3 + $0x130] sm:$0xff]
        %v1948 = vld [vmem:[%s3 + $0x138] sm:$0xff]
        %v1949 = vld [vmem:[%s3 + $0x140] sm:$0xff]
        %v1950 = vld [vmem:[%s3 + $0x148] sm:$0xff]
        %v1951 = vld [vmem:[%s3 + $0x150] sm:$0xff]
        %v1952 = vld [vmem:[%s3 + $0x158] sm:$0xff]
        %v1953 = vld [vmem:[%s3 + $0x160] sm:$0xff]
        %v1954 = vld [vmem:[%s3 + $0x168] sm:$0xff]
        %v1955 = vld [vmem:[%s3 + $0x170] sm:$0xff]
        %v1956 = vld [vmem:[%s3 + $0x178] sm:$0xff]
        %v1957 = vld [vmem:[%s3 + $0x180] sm:$0xff]
        %v1958 = vld [vmem:[%s3 + $0x188] sm:$0xff]
        %v1959 = vld [vmem:[%s3 + $0x190] sm:$0xff]
        %v1960 = vld [vmem:[%s3 + $0x198] sm:$0xff]
        %v1961 = vld [vmem:[%s3 + $0x1a0] sm:$0xff]
        %v1962 = vld [vmem:[%s3 + $0x1a8] sm:$0xff]
        %v1963 = vld [vmem:[%s3 + $0x1b0] sm:$0xff]
        %v1964 = vld [vmem:[%s3 + $0x1b8] sm:$0xff]
        %v1965 = vld [vmem:[%s3 + $0x1c0] sm:$0xff]
        %v1966 = vld [vmem:[%s3 + $0x1c8] sm:$0xff]
        %v1967 = vld [vmem:[%s3 + $0x1d0] sm:$0xff]
        %v1968 = vld [vmem:[%s3 + $0x1d8] sm:$0xff]
        %v1969 = vld [vmem:[%s3 + $0x1e0] sm:$0xff]
        %v1970 = vld [vmem:[%s3 + $0x1e8] sm:$0xff]
        %v1971 = vld [vmem:[%s3 + $0x1f0] sm:$0xff]
        %v1972 = vld [vmem:[%s3 + $0x1f8] sm:$0xff]
        %v1973 = vld [vmem:[%s3 + $0x200] sm:$0xff]
        %v1974 = vld [vmem:[%s3 + $0x208] sm:$0xff]
        %v1975 = vld [vmem:[%s3 + $0x210] sm:$0xff]
        %v1976 = vld [vmem:[%s3 + $0x218] sm:$0xff]
        %v1977 = vld [vmem:[%s3 + $0x220] sm:$0xff]
        %v1978 = vld [vmem:[%s3 + $0x228] sm:$0xff]
        %v1979 = vld [vmem:[%s3 + $0x230] sm:$0xff]
        %v1980 = vld [vmem:[%s3 + $0x238] sm:$0xff]
        %v1981 = vld [vmem:[%s3 + $0x240] sm:$0xff]
        %v1982 = vld [vmem:[%s3 + $0x248] sm:$0xff]
        %v1983 = vld [vmem:[%s3 + $0x250] sm:$0xff]
        %v1984 = vld [vmem:[%s3 + $0x258] sm:$0xff]
        %v1985 = vld [vmem:[%s3 + $0x260] sm:$0xff]
        %v1986 = vld [vmem:[%s3 + $0x268] sm:$0xff]
        %v1987 = vld [vmem:[%s3 + $0x270] sm:$0xff]
        %v1988 = vld [vmem:[%s3 + $0x278] sm:$0xff]
        %v1989 = vld [vmem:[%s3 + $0x280] sm:$0xff]
        %v1990 = vld [vmem:[%s3 + $0x288] sm:$0xff]
        %v1991 = vld [vmem:[%s3 + $0x290] sm:$0xff]
        %v1992 = vld [vmem:[%s3 + $0x298] sm:$0xff]
        %v1993 = vld [vmem:[%s3 + $0x2a0] sm:$0xff]
        %v1994 = vld [vmem:[%s3 + $0x2a8] sm:$0xff]
        %v1995 = vld [vmem:[%s3 + $0x2b0] sm:$0xff]
        %v1996 = vld [vmem:[%s3 + $0x2b8] sm:$0xff]
        %v1997 = vld [vmem:[%s3 + $0x2c0] sm:$0xff]
        %v1998 = vld [vmem:[%s3 + $0x2c8] sm:$0xff]
        %v1999 = vld [vmem:[%s3 + $0x2d0] sm:$0xff]
        %v2000 = vld [vmem:[%s3 + $0x2d8] sm:$0xff]
        %v2001 = vld [vmem:[%s3 + $0x2e0] sm:$0xff]
        %v2002 = vld [vmem:[%s3 + $0x2e8] sm:$0xff]
        %v2003 = vld [vmem:[%s3 + $0x2f0] sm:$0xff]
        %v2004 = vld [vmem:[%s3 + $0x2f8] sm:$0xff]
        %v2005 = vld [vmem:[%s3 + $0x300] sm:$0xff]
        %v2006 = vld [vmem:[%s3 + $0x308] sm:$0xff]
        %v2007 = vld [vmem:[%s3 + $0x310] sm:$0xff]
        %v2008 = vld [vmem:[%s3 + $0x318] sm:$0xff]
        %v2009 = vld [vmem:[%s3 + $0x320] sm:$0xff]
        %v2010 = vld [vmem:[%s3 + $0x328] sm:$0xff]
        %v2011 = vld [vmem:[%s3 + $0x330] sm:$0xff]
        %v2012 = vld [vmem:[%s3 + $0x338] sm:$0xff]
        %v2013 = vld [vmem:[%s3 + $0x340] sm:$0xff]
        %v2014 = vld [vmem:[%s3 + $0x348] sm:$0xff]
        %v2015 = vld [vmem:[%s3 + $0x350] sm:$0xff]
        %v2016 = vld [vmem:[%s3 + $0x358] sm:$0xff]
        %v2017 = vld [vmem:[%s3 + $0x360] sm:$0xff]
        %v2018 = vld [vmem:[%s3 + $0x368] sm:$0xff]
        %v2019 = vld [vmem:[%s3 + $0x370] sm:$0xff]
        %v2020 = vld [vmem:[%s3 + $0x378] sm:$0xff]
        %v2021 = vld [vmem:[%s3 + $0x380] sm:$0xff]
        %v2022 = vld [vmem:[%s3 + $0x388] sm:$0xff]
        %v2023 = vld [vmem:[%s3 + $0x390] sm:$0xff]
        %v2024 = vld [vmem:[%s3 + $0x398] sm:$0xff]
        %v2025 = vld [vmem:[%s3 + $0x3a0] sm:$0xff]
        %v2026 = vld [vmem:[%s3 + $0x3a8] sm:$0xff]
        %v2027 = vld [vmem:[%s3 + $0x3b0] sm:$0xff]
        %v2028 = vld [vmem:[%s3 + $0x3b8] sm:$0xff]
        %v2029 = vld [vmem:[%s3 + $0x3c0] sm:$0xff]
        %v2030 = vld [vmem:[%s3 + $0x3c8] sm:$0xff]
        %v2031 = vld [vmem:[%s3 + $0x3d0] sm:$0xff]
        %v2032 = vld [vmem:[%s3 + $0x3d8] sm:$0xff]
        %v2033 = vld [vmem:[%s3 + $0x3e0] sm:$0xff]
        %v2034 = vld [vmem:[%s3 + $0x3e8] sm:$0xff]
        %v2035 = vld [vmem:[%s3 + $0x3f0] sm:$0xff]
        %v2036 = vld [vmem:[%s3 + $0x3f8] sm:$0xff]
        %v2037 = vld [vmem:[%s4] sm:$0x3]
        %v2166 = vunpack.c.l.b16 %v1909
        %v2167 = vunpack.c.h.b16 %v1909
        %v2168 = vunpack.c.l.b16 %v1910
        %v2169 = vunpack.c.h.b16 %v1910
        %v2170 = vunpack.c.l.b16 %v1911
        %v2171 = vunpack.c.h.b16 %v1911
        %v2172 = vunpack.c.l.b16 %v1912
        %v2173 = vunpack.c.h.b16 %v1912
        %v2174 = vunpack.c.l.b16 %v1913
        %v2175 = vunpack.c.h.b16 %v1913
        %v2176 = vunpack.c.l.b16 %v1914
        %v2177 = vunpack.c.h.b16 %v1914
        %v2178 = vunpack.c.l.b16 %v1915
        %v2179 = vunpack.c.h.b16 %v1915
        %v2180 = vunpack.c.l.b16 %v1916
        %v2181 = vunpack.c.h.b16 %v1916
        %v2182 = vunpack.c.l.b16 %v1917
        %v2183 = vunpack.c.h.b16 %v1917
        %v2184 = vunpack.c.l.b16 %v1918
        %v2185 = vunpack.c.h.b16 %v1918
        %v2186 = vunpack.c.l.b16 %v1919
        %v2187 = vunpack.c.h.b16 %v1919
        %v2188 = vunpack.c.l.b16 %v1920
        %v2189 = vunpack.c.h.b16 %v1920
        %v2190 = vunpack.c.l.b16 %v1921
        %v2191 = vunpack.c.h.b16 %v1921
        %v2192 = vunpack.c.l.b16 %v1922
        %v2193 = vunpack.c.h.b16 %v1922
        %v2194 = vunpack.c.l.b16 %v1923
        %v2195 = vunpack.c.h.b16 %v1923
        %v2196 = vunpack.c.l.b16 %v1924
        %v2197 = vunpack.c.h.b16 %v1924
        %v2198 = vunpack.c.l.b16 %v1925
        %v2199 = vunpack.c.h.b16 %v1925
        %v2200 = vunpack.c.l.b16 %v1926
        %v2201 = vunpack.c.h.b16 %v1926
        %v2202 = vunpack.c.l.b16 %v1927
        %v2203 = vunpack.c.h.b16 %v1927
        %v2204 = vunpack.c.l.b16 %v1928
        %v2205 = vunpack.c.h.b16 %v1928
        %v2206 = vunpack.c.l.b16 %v1929
        %v2207 = vunpack.c.h.b16 %v1929
        %v2208 = vunpack.c.l.b16 %v1930
        %v2209 = vunpack.c.h.b16 %v1930
        %v2210 = vunpack.c.l.b16 %v1931
        %v2211 = vunpack.c.h.b16 %v1931
        %v2212 = vunpack.c.l.b16 %v1932
        %v2213 = vunpack.c.h.b16 %v1932
        %v2214 = vunpack.c.l.b16 %v1933
        %v2215 = vunpack.c.h.b16 %v1933
        %v2216 = vunpack.c.l.b16 %v1934
        %v2217 = vunpack.c.h.b16 %v1934
        %v2218 = vunpack.c.l.b16 %v1935
        %v2219 = vunpack.c.h.b16 %v1935
        %v2220 = vunpack.c.l.b16 %v1936
        %v2221 = vunpack.c.h.b16 %v1936
        %v2222 = vunpack.c.l.b16 %v1937
        %v2223 = vunpack.c.h.b16 %v1937
        %v2224 = vunpack.c.l.b16 %v1938
        %v2225 = vunpack.c.h.b16 %v1938
        %v2226 = vunpack.c.l.b16 %v1939
        %v2227 = vunpack.c.h.b16 %v1939
        %v2228 = vunpack.c.l.b16 %v1940
        %v2229 = vunpack.c.h.b16 %v1940
        %v2230 = vunpack.c.l.b16 %v1941
        %v2231 = vunpack.c.h.b16 %v1941
        %v2232 = vunpack.c.l.b16 %v1942
        %v2233 = vunpack.c.h.b16 %v1942
        %v2234 = vunpack.c.l.b16 %v1943
        %v2235 = vunpack.c.h.b16 %v1943
        %v2236 = vunpack.c.l.b16 %v1944
        %v2237 = vunpack.c.h.b16 %v1944
        %v2238 = vunpack.c.l.b16 %v1945
        %v2239 = vunpack.c.h.b16 %v1945
        %v2240 = vunpack.c.l.b16 %v1946
        %v2241 = vunpack.c.h.b16 %v1946
        %v2242 = vunpack.c.l.b16 %v1947
        %v2243 = vunpack.c.h.b16 %v1947
        %v2244 = vunpack.c.l.b16 %v1948
        %v2245 = vunpack.c.h.b16 %v1948
        %v2246 = vunpack.c.l.b16 %v1949
        %v2247 = vunpack.c.h.b16 %v1949
        %v2248 = vunpack.c.l.b16 %v1950
        %v2249 = vunpack.c.h.b16 %v1950
        %v2250 = vunpack.c.l.b16 %v1951
        %v2251 = vunpack.c.h.b16 %v1951
        %v2252 = vunpack.c.l.b16 %v1952
        %v2253 = vunpack.c.h.b16 %v1952
        %v2254 = vunpack.c.l.b16 %v1953
        %v2255 = vunpack.c.h.b16 %v1953
        %v2256 = vunpack.c.l.b16 %v1954
        %v2257 = vunpack.c.h.b16 %v1954
        %v2258 = vunpack.c.l.b16 %v1955
        %v2259 = vunpack.c.h.b16 %v1955
        %v2260 = vunpack.c.l.b16 %v1956
        %v2261 = vunpack.c.h.b16 %v1956
        %v2262 = vunpack.c.l.b16 %v1957
        %v2263 = vunpack.c.h.b16 %v1957
        %v2264 = vunpack.c.l.b16 %v1958
        %v2265 = vunpack.c.h.b16 %v1958
        %v2266 = vunpack.c.l.b16 %v1959
        %v2267 = vunpack.c.h.b16 %v1959
        %v2268 = vunpack.c.l.b16 %v1960
        %v2269 = vunpack.c.h.b16 %v1960
        %v2270 = vunpack.c.l.b16 %v1961
        %v2271 = vunpack.c.h.b16 %v1961
        %v2272 = vunpack.c.l.b16 %v1962
        %v2273 = vunpack.c.h.b16 %v1962
        %v2274 = vunpack.c.l.b16 %v1963
        %v2275 = vunpack.c.h.b16 %v1963
        %v2276 = vunpack.c.l.b16 %v1964
        %v2277 = vunpack.c.h.b16 %v1964
        %v2278 = vunpack.c.l.b16 %v1965
        %v2279 = vunpack.c.h.b16 %v1965
        %v2280 = vunpack.c.l.b16 %v1966
        %v2281 = vunpack.c.h.b16 %v1966
        %v2282 = vunpack.c.l.b16 %v1967
        %v2283 = vunpack.c.h.b16 %v1967
        %v2284 = vunpack.c.l.b16 %v1968
        %v2285 = vunpack.c.h.b16 %v1968
        %v2286 = vunpack.c.l.b16 %v1969
        %v2287 = vunpack.c.h.b16 %v1969
        %v2288 = vunpack.c.l.b16 %v1970
        %v2289 = vunpack.c.h.b16 %v1970
        %v2290 = vunpack.c.l.b16 %v1971
        %v2291 = vunpack.c.h.b16 %v1971
        %v2292 = vunpack.c.l.b16 %v1972
        %v2293 = vunpack.c.h.b16 %v1972
        %v2294 = vunpack.c.l.b16 %v1973
        %v2295 = vunpack.c.h.b16 %v1973
        %v2296 = vunpack.c.l.b16 %v1974
        %v2297 = vunpack.c.h.b16 %v1974
        %v2298 = vunpack.c.l.b16 %v1975
        %v2299 = vunpack.c.h.b16 %v1975
        %v2300 = vunpack.c.l.b16 %v1976
        %v2301 = vunpack.c.h.b16 %v1976
        %v2302 = vunpack.c.l.b16 %v1977
        %v2303 = vunpack.c.h.b16 %v1977
        %v2304 = vunpack.c.l.b16 %v1978
        %v2305 = vunpack.c.h.b16 %v1978
        %v2306 = vunpack.c.l.b16 %v1979
        %v2307 = vunpack.c.h.b16 %v1979
        %v2308 = vunpack.c.l.b16 %v1980
        %v2309 = vunpack.c.h.b16 %v1980
        %v2310 = vunpack.c.l.b16 %v1981
        %v2311 = vunpack.c.h.b16 %v1981
        %v2312 = vunpack.c.l.b16 %v1982
        %v2313 = vunpack.c.h.b16 %v1982
        %v2314 = vunpack.c.l.b16 %v1983
        %v2315 = vunpack.c.h.b16 %v1983
        %v2316 = vunpack.c.l.b16 %v1984
        %v2317 = vunpack.c.h.b16 %v1984
        %v2318 = vunpack.c.l.b16 %v1985
        %v2319 = vunpack.c.h.b16 %v1985
        %v2320 = vunpack.c.l.b16 %v1986
        %v2321 = vunpack.c.h.b16 %v1986
        %v2322 = vunpack.c.l.b16 %v1987
        %v2323 = vunpack.c.h.b16 %v1987
        %v2324 = vunpack.c.l.b16 %v1988
        %v2325 = vunpack.c.h.b16 %v1988
        %v2326 = vunpack.c.l.b16 %v1989
        %v2327 = vunpack.c.h.b16 %v1989
        %v2328 = vunpack.c.l.b16 %v1990
        %v2329 = vunpack.c.h.b16 %v1990
        %v2330 = vunpack.c.l.b16 %v1991
        %v2331 = vunpack.c.h.b16 %v1991
        %v2332 = vunpack.c.l.b16 %v1992
        %v2333 = vunpack.c.h.b16 %v1992
        %v2334 = vunpack.c.l.b16 %v1993
        %v2335 = vunpack.c.h.b16 %v1993
        %v2336 = vunpack.c.l.b16 %v1994
        %v2337 = vunpack.c.h.b16 %v1994
        %v2338 = vunpack.c.l.b16 %v1995
        %v2339 = vunpack.c.h.b16 %v1995
        %v2340 = vunpack.c.l.b16 %v1996
        %v2341 = vunpack.c.h.b16 %v1996
        %v2342 = vunpack.c.l.b16 %v1997
        %v2343 = vunpack.c.h.b16 %v1997
        %v2344 = vunpack.c.l.b16 %v1998
        %v2345 = vunpack.c.h.b16 %v1998
        %v2346 = vunpack.c.l.b16 %v1999
        %v2347 = vunpack.c.h.b16 %v1999
        %v2348 = vunpack.c.l.b16 %v2000
        %v2349 = vunpack.c.h.b16 %v2000
        %v2350 = vunpack.c.l.b16 %v2001
        %v2351 = vunpack.c.h.b16 %v2001
        %v2352 = vunpack.c.l.b16 %v2002
        %v2353 = vunpack.c.h.b16 %v2002
        %v2354 = vunpack.c.l.b16 %v2003
        %v2355 = vunpack.c.h.b16 %v2003
        %v2356 = vunpack.c.l.b16 %v2004
        %v2357 = vunpack.c.h.b16 %v2004
        %v2358 = vunpack.c.l.b16 %v2005
        %v2359 = vunpack.c.h.b16 %v2005
        %v2360 = vunpack.c.l.b16 %v2006
        %v2361 = vunpack.c.h.b16 %v2006
        %v2362 = vunpack.c.l.b16 %v2007
        %v2363 = vunpack.c.h.b16 %v2007
        %v2364 = vunpack.c.l.b16 %v2008
        %v2365 = vunpack.c.h.b16 %v2008
        %v2366 = vunpack.c.l.b16 %v2009
        %v2367 = vunpack.c.h.b16 %v2009
        %v2368 = vunpack.c.l.b16 %v2010
        %v2369 = vunpack.c.h.b16 %v2010
        %v2370 = vunpack.c.l.b16 %v2011
        %v2371 = vunpack.c.h.b16 %v2011
        %v2372 = vunpack.c.l.b16 %v2012
        %v2373 = vunpack.c.h.b16 %v2012
        %v2374 = vunpack.c.l.b16 %v2013
        %v2375 = vunpack.c.h.b16 %v2013
        %v2376 = vunpack.c.l.b16 %v2014
        %v2377 = vunpack.c.h.b16 %v2014
        %v2378 = vunpack.c.l.b16 %v2015
        %v2379 = vunpack.c.h.b16 %v2015
        %v2380 = vunpack.c.l.b16 %v2016
        %v2381 = vunpack.c.h.b16 %v2016
        %v2382 = vunpack.c.l.b16 %v2017
        %v2383 = vunpack.c.h.b16 %v2017
        %v2384 = vunpack.c.l.b16 %v2018
        %v2385 = vunpack.c.h.b16 %v2018
        %v2386 = vunpack.c.l.b16 %v2019
        %v2387 = vunpack.c.h.b16 %v2019
        %v2388 = vunpack.c.l.b16 %v2020
        %v2389 = vunpack.c.h.b16 %v2020
        %v2390 = vunpack.c.l.b16 %v2021
        %v2391 = vunpack.c.h.b16 %v2021
        %v2392 = vunpack.c.l.b16 %v2022
        %v2393 = vunpack.c.h.b16 %v2022
        %v2394 = vunpack.c.l.b16 %v2023
        %v2395 = vunpack.c.h.b16 %v2023
        %v2396 = vunpack.c.l.b16 %v2024
        %v2397 = vunpack.c.h.b16 %v2024
        %v2398 = vunpack.c.l.b16 %v2025
        %v2399 = vunpack.c.h.b16 %v2025
        %v2400 = vunpack.c.l.b16 %v2026
        %v2401 = vunpack.c.h.b16 %v2026
        %v2402 = vunpack.c.l.b16 %v2027
        %v2403 = vunpack.c.h.b16 %v2027
        %v2404 = vunpack.c.l.b16 %v2028
        %v2405 = vunpack.c.h.b16 %v2028
        %v2406 = vunpack.c.l.b16 %v2029
        %v2407 = vunpack.c.h.b16 %v2029
        %v2408 = vunpack.c.l.b16 %v2030
        %v2409 = vunpack.c.h.b16 %v2030
        %v2410 = vunpack.c.l.b16 %v2031
        %v2411 = vunpack.c.h.b16 %v2031
        %v2412 = vunpack.c.l.b16 %v2032
        %v2413 = vunpack.c.h.b16 %v2032
        %v2414 = vunpack.c.l.b16 %v2033
        %v2415 = vunpack.c.h.b16 %v2033
        %v2416 = vunpack.c.l.b16 %v2034
        %v2417 = vunpack.c.h.b16 %v2034
        %v2418 = vunpack.c.l.b16 %v2035
        %v2419 = vunpack.c.h.b16 %v2035
        %v2420 = vunpack.c.l.b16 %v2036
        %v2421 = vunpack.c.h.b16 %v2036
        %v2422 = vpack.c.b16 %v2168, %v2166
        %v2423 = vpack.c.b16 %v2169, %v2167
        %v2424 = vpack.c.b16 %v2172, %v2170
        %v2425 = vpack.c.b16 %v2173, %v2171
        %v2426 = vpack.c.b16 %v2176, %v2174
        %v2427 = vpack.c.b16 %v2177, %v2175
        %v2428 = vpack.c.b16 %v2180, %v2178
        %v2429 = vpack.c.b16 %v2181, %v2179
        %v2430 = vpack.c.b16 %v2184, %v2182
        %v2431 = vpack.c.b16 %v2185, %v2183
        %v2432 = vpack.c.b16 %v2188, %v2186
        %v2433 = vpack.c.b16 %v2189, %v2187
        %v2434 = vpack.c.b16 %v2192, %v2190
        %v2435 = vpack.c.b16 %v2193, %v2191
        %v2436 = vpack.c.b16 %v2196, %v2194
        %v2437 = vpack.c.b16 %v2197, %v2195
        %v2438 = vpack.c.b16 %v2200, %v2198
        %v2439 = vpack.c.b16 %v2201, %v2199
        %v2440 = vpack.c.b16 %v2204, %v2202
        %v2441 = vpack.c.b16 %v2205, %v2203
        %v2442 = vpack.c.b16 %v2208, %v2206
        %v2443 = vpack.c.b16 %v2209, %v2207
        %v2444 = vpack.c.b16 %v2212, %v2210
        %v2445 = vpack.c.b16 %v2213, %v2211
        %v2446 = vpack.c.b16 %v2216, %v2214
        %v2447 = vpack.c.b16 %v2217, %v2215
        %v2448 = vpack.c.b16 %v2220, %v2218
        %v2449 = vpack.c.b16 %v2221, %v2219
        %v2450 = vpack.c.b16 %v2224, %v2222
        %v2451 = vpack.c.b16 %v2225, %v2223
        %v2452 = vpack.c.b16 %v2228, %v2226
        %v2453 = vpack.c.b16 %v2229, %v2227
        %v2454 = vpack.c.b16 %v2232, %v2230
        %v2455 = vpack.c.b16 %v2233, %v2231
        %v2456 = vpack.c.b16 %v2236, %v2234
        %v2457 = vpack.c.b16 %v2237, %v2235
        %v2458 = vpack.c.b16 %v2240, %v2238
        %v2459 = vpack.c.b16 %v2241, %v2239
        %v2460 = vpack.c.b16 %v2244, %v2242
        %v2461 = vpack.c.b16 %v2245, %v2243
        %v2462 = vpack.c.b16 %v2248, %v2246
        %v2463 = vpack.c.b16 %v2249, %v2247
        %v2464 = vpack.c.b16 %v2252, %v2250
        %v2465 = vpack.c.b16 %v2253, %v2251
        %v2466 = vpack.c.b16 %v2256, %v2254
        %v2467 = vpack.c.b16 %v2257, %v2255
        %v2468 = vpack.c.b16 %v2260, %v2258
        %v2469 = vpack.c.b16 %v2261, %v2259
        %v2470 = vpack.c.b16 %v2264, %v2262
        %v2471 = vpack.c.b16 %v2265, %v2263
        %v2472 = vpack.c.b16 %v2268, %v2266
        %v2473 = vpack.c.b16 %v2269, %v2267
        %v2474 = vpack.c.b16 %v2272, %v2270
        %v2475 = vpack.c.b16 %v2273, %v2271
        %v2476 = vpack.c.b16 %v2276, %v2274
        %v2477 = vpack.c.b16 %v2277, %v2275
        %v2478 = vpack.c.b16 %v2280, %v2278
        %v2479 = vpack.c.b16 %v2281, %v2279
        %v2480 = vpack.c.b16 %v2284, %v2282
        %v2481 = vpack.c.b16 %v2285, %v2283
        %v2482 = vpack.c.b16 %v2288, %v2286
        %v2483 = vpack.c.b16 %v2289, %v2287
        %v2484 = vpack.c.b16 %v2292, %v2290
        %v2485 = vpack.c.b16 %v2293, %v2291
        %v2486 = vpack.c.b16 %v2296, %v2294
        %v2487 = vpack.c.b16 %v2297, %v2295
        %v2488 = vpack.c.b16 %v2300, %v2298
        %v2489 = vpack.c.b16 %v2301, %v2299
        %v2490 = vpack.c.b16 %v2304, %v2302
        %v2491 = vpack.c.b16 %v2305, %v2303
        %v2492 = vpack.c.b16 %v2308, %v2306
        %v2493 = vpack.c.b16 %v2309, %v2307
        %v2494 = vpack.c.b16 %v2312, %v2310
        %v2495 = vpack.c.b16 %v2313, %v2311
        %v2496 = vpack.c.b16 %v2316, %v2314
        %v2497 = vpack.c.b16 %v2317, %v2315
        %v2498 = vpack.c.b16 %v2320, %v2318
        %v2499 = vpack.c.b16 %v2321, %v2319
        %v2500 = vpack.c.b16 %v2324, %v2322
        %v2501 = vpack.c.b16 %v2325, %v2323
        %v2502 = vpack.c.b16 %v2328, %v2326
        %v2503 = vpack.c.b16 %v2329, %v2327
        %v2504 = vpack.c.b16 %v2332, %v2330
        %v2505 = vpack.c.b16 %v2333, %v2331
        %v2506 = vpack.c.b16 %v2336, %v2334
        %v2507 = vpack.c.b16 %v2337, %v2335
        %v2508 = vpack.c.b16 %v2340, %v2338
        %v2509 = vpack.c.b16 %v2341, %v2339
        %v2510 = vpack.c.b16 %v2344, %v2342
        %v2511 = vpack.c.b16 %v2345, %v2343
        %v2512 = vpack.c.b16 %v2348, %v2346
        %v2513 = vpack.c.b16 %v2349, %v2347
        %v2514 = vpack.c.b16 %v2352, %v2350
        %v2515 = vpack.c.b16 %v2353, %v2351
        %v2516 = vpack.c.b16 %v2356, %v2354
        %v2517 = vpack.c.b16 %v2357, %v2355
        %v2518 = vpack.c.b16 %v2360, %v2358
        %v2519 = vpack.c.b16 %v2361, %v2359
        %v2520 = vpack.c.b16 %v2364, %v2362
        %v2521 = vpack.c.b16 %v2365, %v2363
        %v2522 = vpack.c.b16 %v2368, %v2366
        %v2523 = vpack.c.b16 %v2369, %v2367
        %v2524 = vpack.c.b16 %v2372, %v2370
        %v2525 = vpack.c.b16 %v2373, %v2371
        %v2526 = vpack.c.b16 %v2376, %v2374
        %v2527 = vpack.c.b16 %v2377, %v2375
        %v2528 = vpack.c.b16 %v2380, %v2378
        %v2529 = vpack.c.b16 %v2381, %v2379
        %v2530 = vpack.c.b16 %v2384, %v2382
        %v2531 = vpack.c.b16 %v2385, %v2383
        %v2532 = vpack.c.b16 %v2388, %v2386
        %v2533 = vpack.c.b16 %v2389, %v2387
        %v2534 = vpack.c.b16 %v2392, %v2390
        %v2535 = vpack.c.b16 %v2393, %v2391
        %v2536 = vpack.c.b16 %v2396, %v2394
        %v2537 = vpack.c.b16 %v2397, %v2395
        %v2538 = vpack.c.b16 %v2400, %v2398
        %v2539 = vpack.c.b16 %v2401, %v2399
        %v2540 = vpack.c.b16 %v2404, %v2402
        %v2541 = vpack.c.b16 %v2405, %v2403
        %v2542 = vpack.c.b16 %v2408, %v2406
        %v2543 = vpack.c.b16 %v2409, %v2407
        %v2544 = vpack.c.b16 %v2412, %v2410
        %v2545 = vpack.c.b16 %v2413, %v2411
        %v2546 = vpack.c.b16 %v2416, %v2414
        %v2547 = vpack.c.b16 %v2417, %v2415
        %v2548 = vpack.c.b16 %v2420, %v2418
        %v2549 = vpack.c.b16 %v2421, %v2419
        %v2679 = vlaneseq
        %v2680 = vshrl.u32 %v2679, 7
        %v2681 = vsub.s32 0, %v2680
        %v2682 = vrot.slane %v2037, %v2681
        %v2683 = vlaneseq
        %v2684 = vshrl.u32 %v2683, 7
        %v2685 = vsub.s32 1, %v2684
        %v2686 = vrot.slane %v2037, %v2685
        %2689 = vmatprep.subr.bf16.mxu0 %v2437
        %2690 = vmatpush1.bf16.msra.mxu0 %v2436
        %2691 = vmatprep.subr.bf16.mxu0 %v2435
        %2692 = vmatpush1.bf16.msra.mxu0 %v2434
        %2693 = vmatprep.subr.bf16.mxu0 %v2433
        %2694 = vmatpush1.bf16.msra.mxu0 %v2432
        %2695 = vmatprep.subr.bf16.mxu0 %v2431
        %2696 = vmatpush1.bf16.msra.mxu0 %v2430
        %2697 = vmatprep.subr.bf16.mxu0 %v2429
        %2698 = vmatpush1.bf16.msra.mxu0 %v2428
        %2699 = vmatprep.subr.bf16.mxu0 %v2427
        %2700 = vmatpush1.bf16.msra.mxu0 %v2426
        %2701 = vmatprep.subr.bf16.mxu0 %v2425
        %2702 = vmatpush1.bf16.msra.mxu0 %v2424
        %2703 = vmatprep.subr.bf16.mxu0 %v2423
        %2704 = vmatpush1.bf16.msra.mxu0 %v2422
        %2705 = vmatprep.subr.bf16.mxu0 %v2453
        %2706 = vmatpush2.bf16.msra.mxu0 %v2452
        %2707 = vmatprep.subr.bf16.mxu0 %v2451
        %2708 = vmatpush2.bf16.msra.mxu0 %v2450
        %2709 = vmatprep.subr.bf16.mxu0 %v2449
        %2710 = vmatpush2.bf16.msra.mxu0 %v2448
        %2711 = vmatprep.subr.bf16.mxu0 %v2447
        %2712 = vmatpush2.bf16.msra.mxu0 %v2446
        %2713 = vmatprep.subr.bf16.mxu0 %v2445
        %2714 = vmatpush2.bf16.msra.mxu0 %v2444
        %2715 = vmatprep.subr.bf16.mxu0 %v2443
        %2716 = vmatpush2.bf16.msra.mxu0 %v2442
        %2717 = vmatprep.subr.bf16.mxu0 %v2441
        %2718 = vmatpush2.bf16.msra.mxu0 %v2440
        %2719 = vmatprep.subr.bf16.mxu0 %v2439
        %2720 = vmatpush2.bf16.msra.mxu0 %v2438
        %2721 = vmatprep.mubr.bf16.mxu0 %v1902
        %2722 = vmatmul.mubr.bf16.gmra.mxu0 %v1901
        %v2723 = vpop.f32.mrf.mxu0
        %v2724 = vadd.f32 %v2682, %v2723
        %v2725 = vpop.f32.mrf.mxu0
        %v2726 = vadd.f32 %v2686, %v2725
        %v2727 = vpop.f32.mrf.mxu0
        %v2728 = vpop.f32.mrf.mxu0
        %2729 = vdwg.mxu0
        %2730 = vmatprep.subr.bf16.mxu0 %v2469
        %2731 = vmatpush1.bf16.msra.mxu0 %v2468
        %2732 = vmatprep.subr.bf16.mxu0 %v2467
        %2733 = vmatpush1.bf16.msra.mxu0 %v2466
        %2734 = vmatprep.subr.bf16.mxu0 %v2465
        %2735 = vmatpush1.bf16.msra.mxu0 %v2464
        %2736 = vmatprep.subr.bf16.mxu0 %v2463
        %2737 = vmatpush1.bf16.msra.mxu0 %v2462
        %2738 = vmatprep.subr.bf16.mxu0 %v2461
        %2739 = vmatpush1.bf16.msra.mxu0 %v2460
        %2740 = vmatprep.subr.bf16.mxu0 %v2459
        %2741 = vmatpush1.bf16.msra.mxu0 %v2458
        %2742 = vmatprep.subr.bf16.mxu0 %v2457
        %2743 = vmatpush1.bf16.msra.mxu0 %v2456
        %2744 = vmatprep.subr.bf16.mxu0 %v2455
        %2745 = vmatpush1.bf16.msra.mxu0 %v2454
        %2746 = vmatprep.subr.bf16.mxu0 %v2485
        %2747 = vmatpush2.bf16.msra.mxu0 %v2484
        %2748 = vmatprep.subr.bf16.mxu0 %v2483
        %2749 = vmatpush2.bf16.msra.mxu0 %v2482
        %2750 = vmatprep.subr.bf16.mxu0 %v2481
        %2751 = vmatpush2.bf16.msra.mxu0 %v2480
        %2752 = vmatprep.subr.bf16.mxu0 %v2479
        %2753 = vmatpush2.bf16.msra.mxu0 %v2478
        %2754 = vmatprep.subr.bf16.mxu0 %v2477
        %2755 = vmatpush2.bf16.msra.mxu0 %v2476
        %2756 = vmatprep.subr.bf16.mxu0 %v2475
        %2757 = vmatpush2.bf16.msra.mxu0 %v2474
        %2758 = vmatprep.subr.bf16.mxu0 %v2473
        %2759 = vmatpush2.bf16.msra.mxu0 %v2472
        %2760 = vmatprep.subr.bf16.mxu0 %v2471
        %2761 = vmatpush2.bf16.msra.mxu0 %v2470
        %2762 = vmatprep.mubr.bf16.mxu0 %v1904
        %2763 = vmatmul.mubr.bf16.gmra.mxu0 %v1903
        %v2764 = vpop.f32.mrf.mxu0
        %v2765 = vadd.f32 %v2724, %v2764
        %v2766 = vpop.f32.mrf.mxu0
        %v2767 = vadd.f32 %v2726, %v2766
        %v2768 = vpop.f32.mrf.mxu0
        %v2769 = vpop.f32.mrf.mxu0
        %2770 = vdwg.mxu0
        %2771 = vmatprep.subr.bf16.mxu0 %v2501
        %2772 = vmatpush1.bf16.msra.mxu0 %v2500
        %2773 = vmatprep.subr.bf16.mxu0 %v2499
        %2774 = vmatpush1.bf16.msra.mxu0 %v2498
        %2775 = vmatprep.subr.bf16.mxu0 %v2497
        %2776 = vmatpush1.bf16.msra.mxu0 %v2496
        %2777 = vmatprep.subr.bf16.mxu0 %v2495
        %2778 = vmatpush1.bf16.msra.mxu0 %v2494
        %2779 = vmatprep.subr.bf16.mxu0 %v2493
        %2780 = vmatpush1.bf16.msra.mxu0 %v2492
        %2781 = vmatprep.subr.bf16.mxu0 %v2491
        %2782 = vmatpush1.bf16.msra.mxu0 %v2490
        %2783 = vmatprep.subr.bf16.mxu0 %v2489
        %2784 = vmatpush1.bf16.msra.mxu0 %v2488
        %2785 = vmatprep.subr.bf16.mxu0 %v2487
        %2786 = vmatpush1.bf16.msra.mxu0 %v2486
        %2787 = vmatprep.subr.bf16.mxu0 %v2517
        %2788 = vmatpush2.bf16.msra.mxu0 %v2516
        %2789 = vmatprep.subr.bf16.mxu0 %v2515
        %2790 = vmatpush2.bf16.msra.mxu0 %v2514
        %2791 = vmatprep.subr.bf16.mxu0 %v2513
        %2792 = vmatpush2.bf16.msra.mxu0 %v2512
        %2793 = vmatprep.subr.bf16.mxu0 %v2511
        %2794 = vmatpush2.bf16.msra.mxu0 %v2510
        %2795 = vmatprep.subr.bf16.mxu0 %v2509
        %2796 = vmatpush2.bf16.msra.mxu0 %v2508
        %2797 = vmatprep.subr.bf16.mxu0 %v2507
        %2798 = vmatpush2.bf16.msra.mxu0 %v2506
        %2799 = vmatprep.subr.bf16.mxu0 %v2505
        %2800 = vmatpush2.bf16.msra.mxu0 %v2504
        %2801 = vmatprep.subr.bf16.mxu0 %v2503
        %2802 = vmatpush2.bf16.msra.mxu0 %v2502
        %2803 = vmatprep.mubr.bf16.mxu0 %v1906
        %2804 = vmatmul.mubr.bf16.gmra.mxu0 %v1905
        %v2805 = vpop.f32.mrf.mxu0
        %v2806 = vadd.f32 %v2765, %v2805
        %v2807 = vpop.f32.mrf.mxu0
        %v2808 = vadd.f32 %v2767, %v2807
        %v2809 = vpop.f32.mrf.mxu0
        %v2810 = vpop.f32.mrf.mxu0
        %2811 = vdwg.mxu0
        %2812 = vmatprep.subr.bf16.mxu0 %v2533
        %2813 = vmatpush1.bf16.msra.mxu0 %v2532
        %2814 = vmatprep.subr.bf16.mxu0 %v2531
        %2815 = vmatpush1.bf16.msra.mxu0 %v2530
        %2816 = vmatprep.subr.bf16.mxu0 %v2529
        %2817 = vmatpush1.bf16.msra.mxu0 %v2528
        %2818 = vmatprep.subr.bf16.mxu0 %v2527
        %2819 = vmatpush1.bf16.msra.mxu0 %v2526
        %2820 = vmatprep.subr.bf16.mxu0 %v2525
        %2821 = vmatpush1.bf16.msra.mxu0 %v2524
        %2822 = vmatprep.subr.bf16.mxu0 %v2523
        %2823 = vmatpush1.bf16.msra.mxu0 %v2522
        %2824 = vmatprep.subr.bf16.mxu0 %v2521
        %2825 = vmatpush1.bf16.msra.mxu0 %v2520
        %2826 = vmatprep.subr.bf16.mxu0 %v2519
        %2827 = vmatpush1.bf16.msra.mxu0 %v2518
        %2828 = vmatprep.subr.bf16.mxu0 %v2549
        %2829 = vmatpush2.bf16.msra.mxu0 %v2548
        %2830 = vmatprep.subr.bf16.mxu0 %v2547
        %2831 = vmatpush2.bf16.msra.mxu0 %v2546
        %2832 = vmatprep.subr.bf16.mxu0 %v2545
        %2833 = vmatpush2.bf16.msra.mxu0 %v2544
        %2834 = vmatprep.subr.bf16.mxu0 %v2543
        %2835 = vmatpush2.bf16.msra.mxu0 %v2542
        %2836 = vmatprep.subr.bf16.mxu0 %v2541
        %2837 = vmatpush2.bf16.msra.mxu0 %v2540
        %2838 = vmatprep.subr.bf16.mxu0 %v2539
        %2839 = vmatpush2.bf16.msra.mxu0 %v2538
        %2840 = vmatprep.subr.bf16.mxu0 %v2537
        %2841 = vmatpush2.bf16.msra.mxu0 %v2536
        %2842 = vmatprep.subr.bf16.mxu0 %v2535
        %2843 = vmatpush2.bf16.msra.mxu0 %v2534
        %2844 = vmatprep.mubr.bf16.mxu0 %v1908
        %2845 = vmatmul.mubr.bf16.gmra.mxu0 %v1907
        %v2846 = vpop.f32.mrf.mxu0
        %v2847 = vadd.f32 %v2806, %v2846
        %v2848 = vpop.f32.mrf.mxu0
        %v2849 = vadd.f32 %v2808, %v2848
        %v2850 = vpop.f32.mrf.mxu0
        %v2851 = vpop.f32.mrf.mxu0
        %2852 = vdwg.mxu0
        %v2853 = vmax.f32 %v2847, 0.0
        %v2854 = vmax.f32 %v2849, 0.0
        %v2857 = vcombine.low %v2853, %v2854
        %v2859 = vunpack.c.l.s4 1966171168
        %v2860 = vunpack.c.0.s8 %v2859
        %v2861 = vlaneseq
        %v2862 = vshrl.u32 %v2861, 7
        %v2863 = vsub.s32 %v2860, %v2862
        %v2864 = vrot.slane %v2857, %v2863
        %v2866 = vunpack.c.l.s4 1966171168
        %v2867 = vunpack.c.0.s8 %v2866
        %v2868 = vlaneseq
        %v2869 = vshrl.u32 %v2868, 7
        %v2870 = vsub.s32 %v2867, %v2869
        %v2871 = vrot.slane %v2864, %v2870
        %v2873 = vlaneseq
        %vm2874 = vcmp.ge.s32.totalorder %v2873, 0
        %vm2875 = vcmp.lt.s32.totalorder %v2873, 256
        %vm2876 = vmand %vm2874, %vm2875
        %2877 = vst.msk [vmem:[%s329] sm:$0x3] %vm2876, %v2871
        %v2878 = vpack.c.bf16 %v2853, %v2853
        %v2879 = vpack.c.bf16 %v2854, %v2854
        %v2880 = vld [vmem:[%s5] sm:$0xf]
        %v2881 = vld [vmem:[%s5 + $0x4] sm:$0xf]
        %v2882 = vld [vmem:[%s5 + $0x8] sm:$0xf]
        %v2883 = vld [vmem:[%s5 + $0xc] sm:$0xf]
        %v2884 = vld [vmem:[%s5 + $0x10] sm:$0xf]
        %v2885 = vld [vmem:[%s5 + $0x14] sm:$0xf]
        %v2886 = vld [vmem:[%s5 + $0x18] sm:$0xf]
        %v2887 = vld [vmem:[%s5 + $0x1c] sm:$0xf]
        %v2888 = vld [vmem:[%s5 + $0x20] sm:$0xf]
        %v2889 = vld [vmem:[%s5 + $0x24] sm:$0xf]
        %v2890 = vld [vmem:[%s5 + $0x28] sm:$0xf]
        %v2891 = vld [vmem:[%s5 + $0x2c] sm:$0xf]
        %v2892 = vld [vmem:[%s5 + $0x30] sm:$0xf]
        %v2893 = vld [vmem:[%s5 + $0x34] sm:$0xf]
        %v2894 = vld [vmem:[%s5 + $0x38] sm:$0xf]
        %v2895 = vld [vmem:[%s5 + $0x3c] sm:$0xf]
        %v2896 = vld [vmem:[%s5 + $0x40] sm:$0xf]
        %v2897 = vld [vmem:[%s5 + $0x44] sm:$0xf]
        %v2898 = vld [vmem:[%s5 + $0x48] sm:$0xf]
        %v2899 = vld [vmem:[%s5 + $0x4c] sm:$0xf]
        %v2900 = vld [vmem:[%s5 + $0x50] sm:$0xf]
        %v2901 = vld [vmem:[%s5 + $0x54] sm:$0xf]
        %v2902 = vld [vmem:[%s5 + $0x58] sm:$0xf]
        %v2903 = vld [vmem:[%s5 + $0x5c] sm:$0xf]
        %v2904 = vld [vmem:[%s5 + $0x60] sm:$0xf]
        %v2905 = vld [vmem:[%s5 + $0x64] sm:$0xf]
        %v2906 = vld [vmem:[%s5 + $0x68] sm:$0xf]
        %v2907 = vld [vmem:[%s5 + $0x6c] sm:$0xf]
        %v2908 = vld [vmem:[%s5 + $0x70] sm:$0xf]
        %v2909 = vld [vmem:[%s5 + $0x74] sm:$0xf]
        %v2910 = vld [vmem:[%s5 + $0x78] sm:$0xf]
        %v2911 = vld [vmem:[%s5 + $0x7c] sm:$0xf]
        %v2912 = vld [vmem:[%s325] sm:$0x1]
        %v2945 = vunpack.c.l.b16 %v2880
        %v2946 = vunpack.c.l.b16 %v2881
        %v2947 = vunpack.c.l.b16 %v2882
        %v2948 = vunpack.c.l.b16 %v2883
        %v2949 = vunpack.c.l.b16 %v2884
        %v2950 = vunpack.c.l.b16 %v2885
        %v2951 = vunpack.c.l.b16 %v2886
        %v2952 = vunpack.c.l.b16 %v2887
        %v2953 = vunpack.c.l.b16 %v2888
        %v2954 = vunpack.c.l.b16 %v2889
        %v2955 = vunpack.c.l.b16 %v2890
        %v2956 = vunpack.c.l.b16 %v2891
        %v2957 = vunpack.c.l.b16 %v2892
        %v2958 = vunpack.c.l.b16 %v2893
        %v2959 = vunpack.c.l.b16 %v2894
        %v2960 = vunpack.c.l.b16 %v2895
        %v2961 = vunpack.c.l.b16 %v2896
        %v2962 = vunpack.c.l.b16 %v2897
        %v2963 = vunpack.c.l.b16 %v2898
        %v2964 = vunpack.c.l.b16 %v2899
        %v2965 = vunpack.c.l.b16 %v2900
        %v2966 = vunpack.c.l.b16 %v2901
        %v2967 = vunpack.c.l.b16 %v2902
        %v2968 = vunpack.c.l.b16 %v2903
        %v2969 = vunpack.c.l.b16 %v2904
        %v2970 = vunpack.c.l.b16 %v2905
        %v2971 = vunpack.c.l.b16 %v2906
        %v2972 = vunpack.c.l.b16 %v2907
        %v2973 = vunpack.c.l.b16 %v2908
        %v2974 = vunpack.c.l.b16 %v2909
        %v2975 = vunpack.c.l.b16 %v2910
        %v2976 = vunpack.c.l.b16 %v2911
        %v2977 = vpack.c.b16 %v2946, %v2945
        %v2978 = vpack.c.b16 %v2948, %v2947
        %v2979 = vpack.c.b16 %v2950, %v2949
        %v2980 = vpack.c.b16 %v2952, %v2951
        %v2981 = vpack.c.b16 %v2954, %v2953
        %v2982 = vpack.c.b16 %v2956, %v2955
        %v2983 = vpack.c.b16 %v2958, %v2957
        %v2984 = vpack.c.b16 %v2960, %v2959
        %v2985 = vpack.c.b16 %v2962, %v2961
        %v2986 = vpack.c.b16 %v2964, %v2963
        %v2987 = vpack.c.b16 %v2966, %v2965
        %v2988 = vpack.c.b16 %v2968, %v2967
        %v2989 = vpack.c.b16 %v2970, %v2969
        %v2990 = vpack.c.b16 %v2972, %v2971
        %v2991 = vpack.c.b16 %v2974, %v2973
        %v2992 = vpack.c.b16 %v2976, %v2975
        %3009 = vmatprep.subr.bf16.mxu0 0
        %3010 = vmatpush1.bf16.msra.mxu0 %v2984
        %3011 = vmatprep.subr.bf16.mxu0 0
        %3012 = vmatpush1.bf16.msra.mxu0 %v2983
        %3013 = vmatprep.subr.bf16.mxu0 0
        %3014 = vmatpush1.bf16.msra.mxu0 %v2982
        %3015 = vmatprep.subr.bf16.mxu0 0
        %3016 = vmatpush1.bf16.msra.mxu0 %v2981
        %3017 = vmatprep.subr.bf16.mxu0 0
        %3018 = vmatpush1.bf16.msra.mxu0 %v2980
        %3019 = vmatprep.subr.bf16.mxu0 0
        %3020 = vmatpush1.bf16.msra.mxu0 %v2979
        %3021 = vmatprep.subr.bf16.mxu0 0
        %3022 = vmatpush1.bf16.msra.mxu0 %v2978
        %3023 = vmatprep.subr.bf16.mxu0 0
        %3024 = vmatpush1.bf16.msra.mxu0 %v2977
        %3025 = vmatprep.subr.bf16.mxu0 0
        %3026 = vmatpush2.bf16.msra.mxu0 %v2992
        %3027 = vmatprep.subr.bf16.mxu0 0
        %3028 = vmatpush2.bf16.msra.mxu0 %v2991
        %3029 = vmatprep.subr.bf16.mxu0 0
        %3030 = vmatpush2.bf16.msra.mxu0 %v2990
        %3031 = vmatprep.subr.bf16.mxu0 0
        %3032 = vmatpush2.bf16.msra.mxu0 %v2989
        %3033 = vmatprep.subr.bf16.mxu0 0
        %3034 = vmatpush2.bf16.msra.mxu0 %v2988
        %3035 = vmatprep.subr.bf16.mxu0 0
        %3036 = vmatpush2.bf16.msra.mxu0 %v2987
        %3037 = vmatprep.subr.bf16.mxu0 0
        %3038 = vmatpush2.bf16.msra.mxu0 %v2986
        %3039 = vmatprep.subr.bf16.mxu0 0
        %3040 = vmatpush2.bf16.msra.mxu0 %v2985
        %3041 = vmatprep.mubr.bf16.mxu0 %v2879
        %3042 = vmatmul.mubr.bf16.gmra.mxu0 %v2878
        %v3043 = vpop.f32.mrf.mxu0
        %v3044 = vadd.f32 %v2912, %v3043
        %v3045 = vpop.f32.mrf.mxu0
        %v3046 = vpop.f32.mrf.mxu0
        %v3047 = vpop.f32.mrf.mxu0
        %3048 = vdwg.mxu0
        %3049 = vst [vmem:[%s316] sm:$0x1] %v3044
        %p3050 = scmp.lt.s32.totalorder %s23, 1
        %s3051 = scalar_select %p3050, %s23, 1
        %s3052 = smul.addr %s3051, 2
        %s3053 = scalar_lea.vmem %s7, %s3052
        %s3054 = sand.u32 %s214, 1
        %s3055 = scalar_lea.sflag [#allocation3], %s3054
        %s3056 = sand.u32 %s214, 1
        %s3057 = scalar_lea.vmem [#allocation2], %s3056
        // Predicated region
        $region49: #{net_forward.1} parent=47 // pred_check
          %p3058 = pneg %p198
        $region50: #{net_forward.1} parent=47 // pred_check_branch
          %3060 = sbr.rel (%p3058) target = $region52
        $region51: #{net_forward.1} parent=47 // pred_region
          _
        $region52: #{net_forward.1} parent=47 // pred_fallthru
          _
        // Predicated region
        $region53: #{net_forward.1} parent=47 // pred_check
          %p3061 = pneg %p224
        $region54: #{net_forward.1} parent=47 // pred_check_branch
          %3063 = sbr.rel (%p3061) target = $region56
        $region55: #{net_forward.1} parent=47 // pred_region
          %s3065 = ssub.s32 16, 16
          %3066 = vsyncadd %s3055, %s3065
          %s3067 = smul.addr %s23, 16
          %s3068 = scalar_lea.hbm %s8, %s3067
          %s3070 = sshll.u32 %s3057, 4
          %s3071 = int_to_ptr.vmem [resolvable:$true] %s3070
          %3073 = dma.vmem_to_hbm [thread:$0]  %s3071, 16, %s3068, %s3055
        $region56: #{net_forward.1} parent=47 // pred_fallthru
          _
      $region48: #{net_forward.1} parent=5 // pred_fallthru
        _
      %p3074 = scmp.le.s32.totalorder 2, %s18
      // Predicated region
      $region57: #{net_forward.1} parent=5 // pred_check
        %p3075 = pneg %p3074
      $region58: #{net_forward.1} parent=5 // pred_check_branch
        %3077 = sbr.rel (%p3075) target = $region60
      $region59: #{net_forward.1} parent=5 // pred_region
        %s3078 = ssub.s32 %s18, 2
        // Predicated region
        $region61: #{net_forward.1} parent=59 // pred_check
          %p3079 = pneg %p204
        $region62: #{net_forward.1} parent=59 // pred_check_branch
          %3081 = sbr.rel (%p3079) target = $region64
        $region63: #{net_forward.1} parent=59 // pred_region
          %p3082 = scmp.lt.s32.totalorder %s24, 1
          %s3083 = scalar_select %p3082, %s24, 1
          %s3084 = smul.addr %s3083, 2
          %s3085 = scalar_lea.vmem %s7, %s3084
        $region64: #{net_forward.1} parent=59 // pred_fallthru
          _
        // Predicated region
        $region65: #{net_forward.1} parent=59 // pred_check
          %p3086 = pneg %p230
        $region66: #{net_forward.1} parent=59 // pred_check_branch
          %3088 = sbr.rel (%p3086) target = $region68
        $region67: #{net_forward.1} parent=59 // pred_region
          %s3089 = sand.u32 %s215, 1
          %s3090 = scalar_lea.sflag [#allocation3], %s3089
          %s3091 = sand.u32 %s215, 1
          %s3092 = scalar_lea.vmem [#allocation2], %s3091
          %3093 = dma.done %s3090, 16
        $region68: #{net_forward.1} parent=59 // pred_fallthru
          _
      $region60: #{net_forward.1} parent=5 // pred_fallthru
        _
    $region6: #{net_forward.1} parent=1 // loop_footer
      %s22 = sadd.s32 1, %s18
    $region7: #{net_forward.1} parent=1 // loop_footer_branch
      %17 = sbr.rel target = $region3
    $region8: #{net_forward.1} parent=1 // loop_exit
      _
    %3094 = vsyncpa [#allocation3], 1
    %s3095 = scalar_lea.sflag [#allocation3], 1
    %3096 = vsyncpa %s3095, 1

</llo_original>
